<compile_context>
chip_gen: v7x
topology: tpu7x:2x2x1
jax: 0.10.0
libtpu: 0.0.40
codegen_flags: <defaults>
</compile_context>

<pallas_src>
import jax
import jax.numpy as jnp
from jax.experimental import pallas as pl
from jax.experimental.pallas import tpu as pltpu


def _down_kernel(x_ref, w1_ref, s1_ref, b1_ref, w2_ref, s2_ref, b2_ref,
                 out_ref, cp_ref, pad1, imcol1, pad2, imcol2):
    # x_ref:   (1, H, Wo, 2*Cin)  NHWC input, W pre-split into (even, odd) pairs
    # w1_ref:  (9*Cin, Cp)        conv1 taps (HWIO flattened), Cout padded to Cp
    # w2_ref:  (9*Cp,  Cp)        conv2 taps, in/out channels padded to Cp
    # s*/b*:   (1, Cp)            folded BN scale / bias (+conv bias), f32
    # out_ref: (1, Ho*Wo, Cp)     lane-dense output tile (Cp multiple of 128)
    # scratch:
    #   cp_ref : (H, Wo, Cin)       column-pooled activations
    #   pad1   : (Ho+2, Wo+2, Cin)  zero-padded conv1 input
    #   imcol1 : (Ho*Wo, 9*Cin)     im2col matrix for conv1
    #   pad2   : (Ho+2, Wo+2, Cp)   zero-padded conv2 input
    #   imcol2 : (Ho*Wo, 9*Cp)      im2col matrix for conv2
    f32 = jnp.float32
    bf16 = jnp.bfloat16

    H = x_ref.shape[1]
    Wo = x_ref.shape[2]
    Cin = x_ref.shape[3] // 2
    Ho = H // 2
    Cp = out_ref.shape[2]
    HW = Ho * Wo

    # ---------- MaxPool2d(kernel_size=3, stride=2, padding=1), vectorized ----------
    xw = x_ref[0]                      # (H, Wo, 2*Cin), f32
    x_even = xw[:, :, :Cin]            # x[:, 2j,   :]
    x_odd = xw[:, :, Cin:]             # x[:, 2j+1, :]

    # pool along W: window cols {2j-1, 2j, 2j+1}  (col -1 is padding -> ignored)
    cp_ref[...] = jnp.maximum(x_even, x_odd)
    cp_ref[:, 1:, :] = jnp.maximum(cp_ref[:, 1:, :], x_odd[:, :-1, :])

    # pool along H: window rows {2i-1, 2i, 2i+1}  (row -1 is padding -> ignored)
    colpool = cp_ref[...].reshape(Ho, 2, Wo, Cin)
    r_even = colpool[:, 0]                              # rows 2i
    r_odd = colpool[:, 1]                               # rows 2i+1
    pooled = jnp.maximum(r_even, r_odd)                 # (Ho, Wo, Cin)

    # stage pooled activations into the zero-padded conv1 input; the second
    # (bulk) store folds in the row-(2i-1) term for i >= 1.
    pad1[...] = jnp.zeros(pad1.shape, f32)
    pad1[1:Ho + 1, 1:Wo + 1, :] = pooled
    pad1[2:Ho + 1, 1:Wo + 1, :] = jnp.maximum(pooled[1:], r_odd[:-1])

    # ---------- Conv1 (3x3, pad 1) + BN1 + ReLU : im2col + ONE MXU matmul ----------
    for k in range(9):
        di, dj = k // 3, k % 3
        patch = pad1[di:di + Ho, dj:dj + Wo, :]                     # (Ho, Wo, Cin)
        imcol1[:, k * Cin:(k + 1) * Cin] = patch.reshape(HW, Cin)
    h1 = jnp.dot(imcol1[...].astype(bf16), w1_ref[...],
                 preferred_element_type=f32)                        # (HW, Cp)
    h1 = jnp.maximum(h1 * s1_ref[...] + b1_ref[...], 0.0)

    # ---------- Conv2 (3x3, pad 1) + BN2 + ReLU ----------
    pad2[...] = jnp.zeros(pad2.shape, f32)
    pad2[1:Ho + 1, 1:Wo + 1, :] = h1.reshape(Ho, Wo, Cp)            # single bulk store
    for k in range(9):
        di, dj = k // 3, k % 3
        patch = pad2[di:di + Ho, dj:dj + Wo, :]                     # (Ho, Wo, Cp)
        imcol2[:, k * Cp:(k + 1) * Cp] = patch.reshape(HW, Cp)
    h2 = jnp.dot(imcol2[...].astype(bf16), w2_ref[...],
                 preferred_element_type=f32)                        # (HW, Cp)
    out_ref[0] = jnp.maximum(h2 * s2_ref[...] + b2_ref[...], 0.0)   # lane-dense store


def down_pallas(x_nchw, p):
    """Forward of `down(in_ch, out_ch)`; x_nchw is NCHW like the PyTorch module."""
    eps = 1e-5
    N, Cin, H, W = x_nchw.shape
    assert H % 2 == 0 and W % 2 == 0, "even spatial dims expected"
    Cout = p["w1"].shape[-1]
    Ho, Wo = H // 2, W // 2
    HW = Ho * Wo
    Cp = ((Cout + 127) // 128) * 128          # pad channels to a multiple of 128 lanes

    # NCHW -> NHWC, then split W into (Wo, even/odd) pairs: pure layout plumbing.
    x_nhwc = jnp.transpose(x_nchw, (0, 2, 3, 1)).astype(jnp.float32)
    x_split = x_nhwc.reshape(N, H, Wo, 2 * Cin)

    # Fold conv bias + BN (eval mode, running stats) into per-channel scale/bias.
    s1 = p["g1"] / jnp.sqrt(p["v1"] + eps)
    b1 = p["be1"] + (p["cb1"] - p["m1"]) * s1
    s2 = p["g2"] / jnp.sqrt(p["v2"] + eps)
    b2 = p["be2"] + (p["cb2"] - p["m2"]) * s2

    def pad_c(a):                              # zero-pad last dim Cout -> Cp
        return jnp.pad(a, [(0, 0)] * (a.ndim - 1) + [(0, Cp - Cout)])

    w1 = pad_c(p["w1"].reshape(9 * Cin, Cout)).astype(jnp.bfloat16)      # (9*Cin, Cp)
    w2 = p["w2"].reshape(9, Cout, Cout)
    w2 = jnp.pad(w2, ((0, 0), (0, Cp - Cout), (0, Cp - Cout)))
    w2 = w2.reshape(9 * Cp, Cp).astype(jnp.bfloat16)                     # (9*Cp, Cp)
    s1p = pad_c(s1).reshape(1, Cp).astype(jnp.float32)
    b1p = pad_c(b1).reshape(1, Cp).astype(jnp.float32)
    s2p = pad_c(s2).reshape(1, Cp).astype(jnp.float32)
    b2p = pad_c(b2).reshape(1, Cp).astype(jnp.float32)

    out_flat = pl.pallas_call(
        _down_kernel,
        out_shape=jax.ShapeDtypeStruct((N, HW, Cp), jnp.float32),
        grid_spec=pltpu.PrefetchScalarGridSpec(
            num_scalar_prefetch=0,
            grid=(N,),
            in_specs=[
                pl.BlockSpec((1, H, Wo, 2 * Cin), lambda n: (n, 0, 0, 0)),
                pl.BlockSpec((9 * Cin, Cp), lambda n: (0, 0)),
                pl.BlockSpec((1, Cp), lambda n: (0, 0)),
                pl.BlockSpec((1, Cp), lambda n: (0, 0)),
                pl.BlockSpec((9 * Cp, Cp), lambda n: (0, 0)),
                pl.BlockSpec((1, Cp), lambda n: (0, 0)),
                pl.BlockSpec((1, Cp), lambda n: (0, 0)),
            ],
            out_specs=pl.BlockSpec((1, HW, Cp), lambda n: (n, 0, 0)),
            scratch_shapes=[
                pltpu.VMEM((H, Wo, Cin), jnp.float32),          # column-pooled acts
                pltpu.VMEM((Ho + 2, Wo + 2, Cin), jnp.float32),  # padded conv1 input
                pltpu.VMEM((HW, 9 * Cin), jnp.float32),          # im2col conv1
                pltpu.VMEM((Ho + 2, Wo + 2, Cp), jnp.float32),   # padded conv2 input
                pltpu.VMEM((HW, 9 * Cp), jnp.float32),           # im2col conv2
            ],
        ),
        compiler_params=pltpu.CompilerParams(
            dimension_semantics=("parallel",)),   # batch elems independent -> v7x 2 TCs
    )(x_split, w1, s1p, b1p, w2, s2p, b2p)

    out = out_flat[:, :, :Cout].reshape(N, Ho, Wo, Cout)
    return jnp.transpose(out, (0, 3, 1, 2))       # back to NCHW


def down_reference(x_nchw, p):
    """Pure-JAX (XLA, f32/HIGHEST) reference of the same forward pass, NCHW."""
    eps = 1e-5
    pooled = jax.lax.reduce_window(
        x_nchw, -jnp.inf, jax.lax.max,
        window_dimensions=(1, 1, 3, 3),
        window_strides=(1, 1, 2, 2),
        padding=((0, 0), (0, 0), (1, 1), (1, 1)))

    def conv_bn_relu(h, w_hwio, cb, g, be, m, v):
        w_oihw = jnp.transpose(w_hwio, (3, 2, 0, 1))
        y = jax.lax.conv_general_dilated(
            h, w_oihw, window_strides=(1, 1), padding=((1, 1), (1, 1)),
            dimension_numbers=("NCHW", "OIHW", "NCHW"),
            precision=jax.lax.Precision.HIGHEST)
        y = y + cb[None, :, None, None]
        y = (y - m[None, :, None, None]) / jnp.sqrt(v[None, :, None, None] + eps)
        y = y * g[None, :, None, None] + be[None, :, None, None]
        return jnp.maximum(y, 0.0)

    h = conv_bn_relu(pooled, p["w1"], p["cb1"], p["g1"], p["be1"], p["m1"], p["v1"])
    h = conv_bn_relu(h, p["w2"], p["cb2"], p["g2"], p["be2"], p["m2"], p["v2"])
    return h


if __name__ == "__main__":
    N, in_ch, out_ch, H, W = 2, 4, 8, 16, 16

    key = jax.random.PRNGKey(0)
    ks = jax.random.split(key, 14)
    x = jax.random.normal(ks[0], (N, in_ch, H, W), jnp.float32)

    params = {
        # conv weights in HWIO
        "w1": jax.random.normal(ks[1], (3, 3, in_ch, out_ch), jnp.float32)
              * (1.0 / float(jnp.sqrt(9.0 * in_ch))),
        "cb1": jax.random.normal(ks[2], (out_ch,), jnp.float32) * 0.1,
        "g1": jax.random.uniform(ks[3], (out_ch,), jnp.float32, 0.5, 1.5),
        "be1": jax.random.normal(ks[4], (out_ch,), jnp.float32) * 0.1,
        "m1": jax.random.normal(ks[5], (out_ch,), jnp.float32) * 0.1,
        "v1": jax.random.uniform(ks[6], (out_ch,), jnp.float32, 0.5, 1.5),
        "w2": jax.random.normal(ks[7], (3, 3, out_ch, out_ch), jnp.float32)
              * (1.0 / float(jnp.sqrt(9.0 * out_ch))),
        "cb2": jax.random.normal(ks[8], (out_ch,), jnp.float32) * 0.1,
        "g2": jax.random.uniform(ks[9], (out_ch,), jnp.float32, 0.5, 1.5),
        "be2": jax.random.normal(ks[10], (out_ch,), jnp.float32) * 0.1,
        "m2": jax.random.normal(ks[11], (out_ch,), jnp.float32) * 0.1,
        "v2": jax.random.uniform(ks[12], (out_ch,), jnp.float32, 0.5, 1.5),
    }

    out = jax.jit(down_pallas)(x, params)
    out = jax.block_until_ready(out)

    ref = jax.block_until_ready(down_reference(x, params))
    assert out.shape == ref.shape == (N, out_ch, H // 2, W // 2), (out.shape, ref.shape)
    max_err = float(jnp.max(jnp.abs(out - ref)))
    # bf16 MXU operands (single-pass matmuls) over K=36/72 reductions of O(1)
    # values give ~1e-2-scale abs error vs the f32/HIGHEST reference.
    assert max_err < 5e-2, f"mismatch vs reference, max abs err = {max_err}"

    print("KERNEL_OK")
</pallas_src>

<mosaic_0001>
module attributes {stable_mosaic.version = 11 : i64} {
  func.func @_down_kernel(%arg0: i32, %arg1: memref<1x16x8x8xf32, #tpu.memory_space<vmem>>, %arg2: memref<36x128xbf16, #tpu.memory_space<vmem>>, %arg3: memref<1x128xf32, #tpu.memory_space<vmem>>, %arg4: memref<1x128xf32, #tpu.memory_space<vmem>>, %arg5: memref<1152x128xbf16, #tpu.memory_space<vmem>>, %arg6: memref<1x128xf32, #tpu.memory_space<vmem>>, %arg7: memref<1x128xf32, #tpu.memory_space<vmem>>, %arg8: memref<1x64x128xf32, #tpu.memory_space<vmem>>, %arg9: memref<16x8x4xf32, #tpu.memory_space<vmem>>, %arg10: memref<10x10x4xf32, #tpu.memory_space<vmem>>, %arg11: memref<64x36xf32, #tpu.memory_space<vmem>>, %arg12: memref<10x10x128xf32, #tpu.memory_space<vmem>>, %arg13: memref<64x1152xf32, #tpu.memory_space<vmem>>) attributes {dimension_semantics = [#tpu.dimension_semantics<parallel>], iteration_bounds = array<i64: 2>, scalar_prefetch = 0 : i64, scratch_operands = 5 : i64, tpu.core_type = #tpu.core_type<tc>, window_params = [{transform_indices = @transform_0, window_bounds = array<i64: 1, 16, 8, 8>}, {pipeline_mode = #tpu.pipeline_mode<synchronous>, transform_indices = @transform_1, window_bounds = array<i64: 36, 128>}, {pipeline_mode = #tpu.pipeline_mode<synchronous>, transform_indices = @transform_2, window_bounds = array<i64: 1, 128>}, {pipeline_mode = #tpu.pipeline_mode<synchronous>, transform_indices = @transform_3, window_bounds = array<i64: 1, 128>}, {pipeline_mode = #tpu.pipeline_mode<synchronous>, transform_indices = @transform_4, window_bounds = array<i64: 1152, 128>}, {pipeline_mode = #tpu.pipeline_mode<synchronous>, transform_indices = @transform_5, window_bounds = array<i64: 1, 128>}, {pipeline_mode = #tpu.pipeline_mode<synchronous>, transform_indices = @transform_6, window_bounds = array<i64: 1, 128>}, {transform_indices = @transform_7, window_bounds = array<i64: 1, 64, 128>}]} {
    %c0 = arith.constant 0 : index
    %c0_0 = arith.constant 0 : index
    %c0_1 = arith.constant 0 : index
    %c0_2 = arith.constant 0 : index
    %0 = vector.load %arg1[%c0, %c0_0, %c0_1, %c0_2] : memref<1x16x8x8xf32, #tpu.memory_space<vmem>>, vector<1x16x8x8xf32>
    %1 = vector.shape_cast %0 : vector<1x16x8x8xf32> to vector<16x8x8xf32>
    %2 = vector.extract_strided_slice %1 {offsets = [0, 0, 0], sizes = [16, 8, 4], strides = [1, 1, 1]} : vector<16x8x8xf32> to vector<16x8x4xf32>
    %3 = vector.extract_strided_slice %1 {offsets = [0, 0, 4], sizes = [16, 8, 4], strides = [1, 1, 1]} : vector<16x8x8xf32> to vector<16x8x4xf32>
    %4 = arith.maximumf %2, %3 : vector<16x8x4xf32>
    %c0_3 = arith.constant 0 : index
    %c0_4 = arith.constant 0 : index
    %c0_5 = arith.constant 0 : index
    %5 = vector.load %arg9[%c0_3, %c0_4, %c0_5] : memref<16x8x4xf32, #tpu.memory_space<vmem>>, vector<16x8x4xf32>
    tpu.vector_store %arg9[%c0_3, %c0_4, %c0_5], %4 {strides = array<i32>} : memref<16x8x4xf32, #tpu.memory_space<vmem>>, vector<16x8x4xf32>,
    %c0_6 = arith.constant 0 : index
    %c1 = arith.constant 1 : index
    %c0_7 = arith.constant 0 : index
    %6 = vector.load %arg9[%c0_6, %c1, %c0_7] : memref<16x8x4xf32, #tpu.memory_space<vmem>>, vector<16x7x4xf32>
    %7 = vector.extract_strided_slice %3 {offsets = [0, 0, 0], sizes = [16, 7, 4], strides = [1, 1, 1]} : vector<16x8x4xf32> to vector<16x7x4xf32>
    %8 = arith.maximumf %6, %7 : vector<16x7x4xf32>
    %c0_8 = arith.constant 0 : index
    %c1_9 = arith.constant 1 : index
    %c0_10 = arith.constant 0 : index
    %9 = vector.load %arg9[%c0_8, %c1_9, %c0_10] : memref<16x8x4xf32, #tpu.memory_space<vmem>>, vector<16x7x4xf32>
    tpu.vector_store %arg9[%c0_8, %c1_9, %c0_10], %8 {strides = array<i32>} : memref<16x8x4xf32, #tpu.memory_space<vmem>>, vector<16x7x4xf32>,
    %c0_11 = arith.constant 0 : index
    %c0_12 = arith.constant 0 : index
    %c0_13 = arith.constant 0 : index
    %10 = vector.load %arg9[%c0_11, %c0_12, %c0_13] : memref<16x8x4xf32, #tpu.memory_space<vmem>>, vector<16x8x4xf32>
    %11 = vector.shape_cast %10 : vector<16x8x4xf32> to vector<8x2x8x4xf32>
    %12 = vector.extract_strided_slice %11 {offsets = [0, 0, 0, 0], sizes = [8, 1, 8, 4], strides = [1, 1, 1, 1]} : vector<8x2x8x4xf32> to vector<8x1x8x4xf32>
    %13 = vector.shape_cast %12 : vector<8x1x8x4xf32> to vector<8x8x4xf32>
    %14 = vector.extract_strided_slice %11 {offsets = [0, 1, 0, 0], sizes = [8, 1, 8, 4], strides = [1, 1, 1, 1]} : vector<8x2x8x4xf32> to vector<8x1x8x4xf32>
    %15 = vector.shape_cast %14 : vector<8x1x8x4xf32> to vector<8x8x4xf32>
    %16 = arith.maximumf %13, %15 : vector<8x8x4xf32>
    %cst = arith.constant 0.000000e+00 : f32
    %17 = vector.broadcast %cst : f32 to vector<10x10x4xf32>
    %c0_14 = arith.constant 0 : index
    %c0_15 = arith.constant 0 : index
    %c0_16 = arith.constant 0 : index
    %18 = vector.load %arg10[%c0_14, %c0_15, %c0_16] : memref<10x10x4xf32, #tpu.memory_space<vmem>>, vector<10x10x4xf32>
    tpu.vector_store %arg10[%c0_14, %c0_15, %c0_16], %17 {strides = array<i32>} : memref<10x10x4xf32, #tpu.memory_space<vmem>>, vector<10x10x4xf32>,
    %c1_17 = arith.constant 1 : index
    %c1_18 = arith.constant 1 : index
    %c0_19 = arith.constant 0 : index
    %19 = vector.load %arg10[%c1_17, %c1_18, %c0_19] : memref<10x10x4xf32, #tpu.memory_space<vmem>>, vector<8x8x4xf32>
    tpu.vector_store %arg10[%c1_17, %c1_18, %c0_19], %16 {strides = array<i32>} : memref<10x10x4xf32, #tpu.memory_space<vmem>>, vector<8x8x4xf32>,
    %20 = vector.extract_strided_slice %16 {offsets = [1, 0, 0], sizes = [7, 8, 4], strides = [1, 1, 1]} : vector<8x8x4xf32> to vector<7x8x4xf32>
    %21 = vector.extract_strided_slice %15 {offsets = [0, 0, 0], sizes = [7, 8, 4], strides = [1, 1, 1]} : vector<8x8x4xf32> to vector<7x8x4xf32>
    %22 = arith.maximumf %20, %21 : vector<7x8x4xf32>
    %c2 = arith.constant 2 : index
    %c1_20 = arith.constant 1 : index
    %c0_21 = arith.constant 0 : index
    %23 = vector.load %arg10[%c2, %c1_20, %c0_21] : memref<10x10x4xf32, #tpu.memory_space<vmem>>, vector<7x8x4xf32>
    tpu.vector_store %arg10[%c2, %c1_20, %c0_21], %22 {strides = array<i32>} : memref<10x10x4xf32, #tpu.memory_space<vmem>>, vector<7x8x4xf32>,
    %c0_22 = arith.constant 0 : index
    %c0_23 = arith.constant 0 : index
    %c0_24 = arith.constant 0 : index
    %24 = vector.load %arg10[%c0_22, %c0_23, %c0_24] : memref<10x10x4xf32, #tpu.memory_space<vmem>>, vector<8x8x4xf32>
    %25 = vector.shape_cast %24 : vector<8x8x4xf32> to vector<64x4xf32>
    %c0_25 = arith.constant 0 : index
    %c0_26 = arith.constant 0 : index
    %26 = vector.load %arg11[%c0_25, %c0_26] : memref<64x36xf32, #tpu.memory_space<vmem>>, vector<64x4xf32>
    tpu.vector_store %arg11[%c0_25, %c0_26], %25 {strides = array<i32>} : memref<64x36xf32, #tpu.memory_space<vmem>>, vector<64x4xf32>,
    %c0_27 = arith.constant 0 : index
    %c1_28 = arith.constant 1 : index
    %c0_29 = arith.constant 0 : index
    %27 = vector.load %arg10[%c0_27, %c1_28, %c0_29] : memref<10x10x4xf32, #tpu.memory_space<vmem>>, vector<8x8x4xf32>
    %28 = vector.shape_cast %27 : vector<8x8x4xf32> to vector<64x4xf32>
    %c0_30 = arith.constant 0 : index
    %c4 = arith.constant 4 : index
    %29 = vector.load %arg11[%c0_30, %c4] : memref<64x36xf32, #tpu.memory_space<vmem>>, vector<64x4xf32>
    tpu.vector_store %arg11[%c0_30, %c4], %28 {strides = array<i32>} : memref<64x36xf32, #tpu.memory_space<vmem>>, vector<64x4xf32>,
    %c0_31 = arith.constant 0 : index
    %c2_32 = arith.constant 2 : index
    %c0_33 = arith.constant 0 : index
    %30 = vector.load %arg10[%c0_31, %c2_32, %c0_33] : memref<10x10x4xf32, #tpu.memory_space<vmem>>, vector<8x8x4xf32>
    %31 = vector.shape_cast %30 : vector<8x8x4xf32> to vector<64x4xf32>
    %c0_34 = arith.constant 0 : index
    %c8 = arith.constant 8 : index
    %32 = vector.load %arg11[%c0_34, %c8] : memref<64x36xf32, #tpu.memory_space<vmem>>, vector<64x4xf32>
    tpu.vector_store %arg11[%c0_34, %c8], %31 {strides = array<i32>} : memref<64x36xf32, #tpu.memory_space<vmem>>, vector<64x4xf32>,
    %c1_35 = arith.constant 1 : index
    %c0_36 = arith.constant 0 : index
    %c0_37 = arith.constant 0 : index
    %33 = vector.load %arg10[%c1_35, %c0_36, %c0_37] : memref<10x10x4xf32, #tpu.memory_space<vmem>>, vector<8x8x4xf32>
    %34 = vector.shape_cast %33 : vector<8x8x4xf32> to vector<64x4xf32>
    %c0_38 = arith.constant 0 : index
    %c12 = arith.constant 12 : index
    %35 = vector.load %arg11[%c0_38, %c12] : memref<64x36xf32, #tpu.memory_space<vmem>>, vector<64x4xf32>
    tpu.vector_store %arg11[%c0_38, %c12], %34 {strides = array<i32>} : memref<64x36xf32, #tpu.memory_space<vmem>>, vector<64x4xf32>,
    %c1_39 = arith.constant 1 : index
    %c1_40 = arith.constant 1 : index
    %c0_41 = arith.constant 0 : index
    %36 = vector.load %arg10[%c1_39, %c1_40, %c0_41] : memref<10x10x4xf32, #tpu.memory_space<vmem>>, vector<8x8x4xf32>
    %37 = vector.shape_cast %36 : vector<8x8x4xf32> to vector<64x4xf32>
    %c0_42 = arith.constant 0 : index
    %c16 = arith.constant 16 : index
    %38 = vector.load %arg11[%c0_42, %c16] : memref<64x36xf32, #tpu.memory_space<vmem>>, vector<64x4xf32>
    tpu.vector_store %arg11[%c0_42, %c16], %37 {strides = array<i32>} : memref<64x36xf32, #tpu.memory_space<vmem>>, vector<64x4xf32>,
    %c1_43 = arith.constant 1 : index
    %c2_44 = arith.constant 2 : index
    %c0_45 = arith.constant 0 : index
    %39 = vector.load %arg10[%c1_43, %c2_44, %c0_45] : memref<10x10x4xf32, #tpu.memory_space<vmem>>, vector<8x8x4xf32>
    %40 = vector.shape_cast %39 : vector<8x8x4xf32> to vector<64x4xf32>
    %c0_46 = arith.constant 0 : index
    %c20 = arith.constant 20 : index
    %41 = vector.load %arg11[%c0_46, %c20] : memref<64x36xf32, #tpu.memory_space<vmem>>, vector<64x4xf32>
    tpu.vector_store %arg11[%c0_46, %c20], %40 {strides = array<i32>} : memref<64x36xf32, #tpu.memory_space<vmem>>, vector<64x4xf32>,
    %c2_47 = arith.constant 2 : index
    %c0_48 = arith.constant 0 : index
    %c0_49 = arith.constant 0 : index
    %42 = vector.load %arg10[%c2_47, %c0_48, %c0_49] : memref<10x10x4xf32, #tpu.memory_space<vmem>>, vector<8x8x4xf32>
    %43 = vector.shape_cast %42 : vector<8x8x4xf32> to vector<64x4xf32>
    %c0_50 = arith.constant 0 : index
    %c24 = arith.constant 24 : index
    %44 = vector.load %arg11[%c0_50, %c24] : memref<64x36xf32, #tpu.memory_space<vmem>>, vector<64x4xf32>
    tpu.vector_store %arg11[%c0_50, %c24], %43 {strides = array<i32>} : memref<64x36xf32, #tpu.memory_space<vmem>>, vector<64x4xf32>,
    %c2_51 = arith.constant 2 : index
    %c1_52 = arith.constant 1 : index
    %c0_53 = arith.constant 0 : index
    %45 = vector.load %arg10[%c2_51, %c1_52, %c0_53] : memref<10x10x4xf32, #tpu.memory_space<vmem>>, vector<8x8x4xf32>
    %46 = vector.shape_cast %45 : vector<8x8x4xf32> to vector<64x4xf32>
    %c0_54 = arith.constant 0 : index
    %c28 = arith.constant 28 : index
    %47 = vector.load %arg11[%c0_54, %c28] : memref<64x36xf32, #tpu.memory_space<vmem>>, vector<64x4xf32>
    tpu.vector_store %arg11[%c0_54, %c28], %46 {strides = array<i32>} : memref<64x36xf32, #tpu.memory_space<vmem>>, vector<64x4xf32>,
    %c2_55 = arith.constant 2 : index
    %c2_56 = arith.constant 2 : index
    %c0_57 = arith.constant 0 : index
    %48 = vector.load %arg10[%c2_55, %c2_56, %c0_57] : memref<10x10x4xf32, #tpu.memory_space<vmem>>, vector<8x8x4xf32>
    %49 = vector.shape_cast %48 : vector<8x8x4xf32> to vector<64x4xf32>
    %c0_58 = arith.constant 0 : index
    %c32 = arith.constant 32 : index
    %50 = vector.load %arg11[%c0_58, %c32] : memref<64x36xf32, #tpu.memory_space<vmem>>, vector<64x4xf32>
    tpu.vector_store %arg11[%c0_58, %c32], %49 {strides = array<i32>} : memref<64x36xf32, #tpu.memory_space<vmem>>, vector<64x4xf32>,
    %c0_59 = arith.constant 0 : index
    %c0_60 = arith.constant 0 : index
    %51 = vector.load %arg11[%c0_59, %c0_60] : memref<64x36xf32, #tpu.memory_space<vmem>>, vector<64x36xf32>
    %52 = arith.truncf %51 : vector<64x36xf32> to vector<64x36xbf16>
    %c0_61 = arith.constant 0 : index
    %c0_62 = arith.constant 0 : index
    %53 = vector.load %arg2[%c0_61, %c0_62] : memref<36x128xbf16, #tpu.memory_space<vmem>>, vector<36x128xbf16>
    %cst_63 = arith.constant dense<0.000000e+00> : vector<64x128xf32>
    %54 = tpu.matmul %52, %53, %cst_63 {dimension_numbers = #tpu.dot_dimension_numbers<[1], [0], [0], [1], [0, 0, 1, 1], [], []>} : vector<64x36xbf16>, vector<36x128xbf16>, vector<64x128xf32> -> vector<64x128xf32>
    %c0_64 = arith.constant 0 : index
    %c0_65 = arith.constant 0 : index
    %55 = vector.load %arg3[%c0_64, %c0_65] : memref<1x128xf32, #tpu.memory_space<vmem>>, vector<1x128xf32>
    %56 = vector.broadcast %55 : vector<1x128xf32> to vector<64x128xf32>
    %57 = arith.mulf %54, %56 : vector<64x128xf32>
    %c0_66 = arith.constant 0 : index
    %c0_67 = arith.constant 0 : index
    %58 = vector.load %arg4[%c0_66, %c0_67] : memref<1x128xf32, #tpu.memory_space<vmem>>, vector<1x128xf32>
    %59 = vector.broadcast %58 : vector<1x128xf32> to vector<64x128xf32>
    %60 = arith.addf %57, %59 : vector<64x128xf32>
    %cst_68 = arith.constant 0.000000e+00 : f32
    %61 = vector.broadcast %cst_68 : f32 to vector<64x128xf32>
    %62 = arith.maximumf %60, %61 : vector<64x128xf32>
    %cst_69 = arith.constant 0.000000e+00 : f32
    %63 = vector.broadcast %cst_69 : f32 to vector<10x10x128xf32>
    %c0_70 = arith.constant 0 : index
    %c0_71 = arith.constant 0 : index
    %c0_72 = arith.constant 0 : index
    %64 = vector.load %arg12[%c0_70, %c0_71, %c0_72] : memref<10x10x128xf32, #tpu.memory_space<vmem>>, vector<10x10x128xf32>
    tpu.vector_store %arg12[%c0_70, %c0_71, %c0_72], %63 {strides = array<i32>} : memref<10x10x128xf32, #tpu.memory_space<vmem>>, vector<10x10x128xf32>,
    %65 = vector.shape_cast %62 : vector<64x128xf32> to vector<8x8x128xf32>
    %c1_73 = arith.constant 1 : index
    %c1_74 = arith.constant 1 : index
    %c0_75 = arith.constant 0 : index
    %66 = vector.load %arg12[%c1_73, %c1_74, %c0_75] : memref<10x10x128xf32, #tpu.memory_space<vmem>>, vector<8x8x128xf32>
    tpu.vector_store %arg12[%c1_73, %c1_74, %c0_75], %65 {strides = array<i32>} : memref<10x10x128xf32, #tpu.memory_space<vmem>>, vector<8x8x128xf32>,
    %c0_76 = arith.constant 0 : index
    %c0_77 = arith.constant 0 : index
    %c0_78 = arith.constant 0 : index
    %67 = vector.load %arg12[%c0_76, %c0_77, %c0_78] : memref<10x10x128xf32, #tpu.memory_space<vmem>>, vector<8x8x128xf32>
    %68 = vector.shape_cast %67 : vector<8x8x128xf32> to vector<64x128xf32>
    %c0_79 = arith.constant 0 : index
    %c0_80 = arith.constant 0 : index
    %69 = vector.load %arg13[%c0_79, %c0_80] : memref<64x1152xf32, #tpu.memory_space<vmem>>, vector<64x128xf32>
    tpu.vector_store %arg13[%c0_79, %c0_80], %68 {strides = array<i32>} : memref<64x1152xf32, #tpu.memory_space<vmem>>, vector<64x128xf32>,
    %c0_81 = arith.constant 0 : index
    %c1_82 = arith.constant 1 : index
    %c0_83 = arith.constant 0 : index
    %70 = vector.load %arg12[%c0_81, %c1_82, %c0_83] : memref<10x10x128xf32, #tpu.memory_space<vmem>>, vector<8x8x128xf32>
    %71 = vector.shape_cast %70 : vector<8x8x128xf32> to vector<64x128xf32>
    %c0_84 = arith.constant 0 : index
    %c128 = arith.constant 128 : index
    %72 = vector.load %arg13[%c0_84, %c128] : memref<64x1152xf32, #tpu.memory_space<vmem>>, vector<64x128xf32>
    tpu.vector_store %arg13[%c0_84, %c128], %71 {strides = array<i32>} : memref<64x1152xf32, #tpu.memory_space<vmem>>, vector<64x128xf32>,
    %c0_85 = arith.constant 0 : index
    %c2_86 = arith.constant 2 : index
    %c0_87 = arith.constant 0 : index
    %73 = vector.load %arg12[%c0_85, %c2_86, %c0_87] : memref<10x10x128xf32, #tpu.memory_space<vmem>>, vector<8x8x128xf32>
    %74 = vector.shape_cast %73 : vector<8x8x128xf32> to vector<64x128xf32>
    %c0_88 = arith.constant 0 : index
    %c256 = arith.constant 256 : index
    %75 = vector.load %arg13[%c0_88, %c256] : memref<64x1152xf32, #tpu.memory_space<vmem>>, vector<64x128xf32>
    tpu.vector_store %arg13[%c0_88, %c256], %74 {strides = array<i32>} : memref<64x1152xf32, #tpu.memory_space<vmem>>, vector<64x128xf32>,
    %c1_89 = arith.constant 1 : index
    %c0_90 = arith.constant 0 : index
    %c0_91 = arith.constant 0 : index
    %76 = vector.load %arg12[%c1_89, %c0_90, %c0_91] : memref<10x10x128xf32, #tpu.memory_space<vmem>>, vector<8x8x128xf32>
    %77 = vector.shape_cast %76 : vector<8x8x128xf32> to vector<64x128xf32>
    %c0_92 = arith.constant 0 : index
    %c384 = arith.constant 384 : index
    %78 = vector.load %arg13[%c0_92, %c384] : memref<64x1152xf32, #tpu.memory_space<vmem>>, vector<64x128xf32>
    tpu.vector_store %arg13[%c0_92, %c384], %77 {strides = array<i32>} : memref<64x1152xf32, #tpu.memory_space<vmem>>, vector<64x128xf32>,
    %c1_93 = arith.constant 1 : index
    %c1_94 = arith.constant 1 : index
    %c0_95 = arith.constant 0 : index
    %79 = vector.load %arg12[%c1_93, %c1_94, %c0_95] : memref<10x10x128xf32, #tpu.memory_space<vmem>>, vector<8x8x128xf32>
    %80 = vector.shape_cast %79 : vector<8x8x128xf32> to vector<64x128xf32>
    %c0_96 = arith.constant 0 : index
    %c512 = arith.constant 512 : index
    %81 = vector.load %arg13[%c0_96, %c512] : memref<64x1152xf32, #tpu.memory_space<vmem>>, vector<64x128xf32>
    tpu.vector_store %arg13[%c0_96, %c512], %80 {strides = array<i32>} : memref<64x1152xf32, #tpu.memory_space<vmem>>, vector<64x128xf32>,
    %c1_97 = arith.constant 1 : index
    %c2_98 = arith.constant 2 : index
    %c0_99 = arith.constant 0 : index
    %82 = vector.load %arg12[%c1_97, %c2_98, %c0_99] : memref<10x10x128xf32, #tpu.memory_space<vmem>>, vector<8x8x128xf32>
    %83 = vector.shape_cast %82 : vector<8x8x128xf32> to vector<64x128xf32>
    %c0_100 = arith.constant 0 : index
    %c640 = arith.constant 640 : index
    %84 = vector.load %arg13[%c0_100, %c640] : memref<64x1152xf32, #tpu.memory_space<vmem>>, vector<64x128xf32>
    tpu.vector_store %arg13[%c0_100, %c640], %83 {strides = array<i32>} : memref<64x1152xf32, #tpu.memory_space<vmem>>, vector<64x128xf32>,
    %c2_101 = arith.constant 2 : index
    %c0_102 = arith.constant 0 : index
    %c0_103 = arith.constant 0 : index
    %85 = vector.load %arg12[%c2_101, %c0_102, %c0_103] : memref<10x10x128xf32, #tpu.memory_space<vmem>>, vector<8x8x128xf32>
    %86 = vector.shape_cast %85 : vector<8x8x128xf32> to vector<64x128xf32>
    %c0_104 = arith.constant 0 : index
    %c768 = arith.constant 768 : index
    %87 = vector.load %arg13[%c0_104, %c768] : memref<64x1152xf32, #tpu.memory_space<vmem>>, vector<64x128xf32>
    tpu.vector_store %arg13[%c0_104, %c768], %86 {strides = array<i32>} : memref<64x1152xf32, #tpu.memory_space<vmem>>, vector<64x128xf32>,
    %c2_105 = arith.constant 2 : index
    %c1_106 = arith.constant 1 : index
    %c0_107 = arith.constant 0 : index
    %88 = vector.load %arg12[%c2_105, %c1_106, %c0_107] : memref<10x10x128xf32, #tpu.memory_space<vmem>>, vector<8x8x128xf32>
    %89 = vector.shape_cast %88 : vector<8x8x128xf32> to vector<64x128xf32>
    %c0_108 = arith.constant 0 : index
    %c896 = arith.constant 896 : index
    %90 = vector.load %arg13[%c0_108, %c896] : memref<64x1152xf32, #tpu.memory_space<vmem>>, vector<64x128xf32>
    tpu.vector_store %arg13[%c0_108, %c896], %89 {strides = array<i32>} : memref<64x1152xf32, #tpu.memory_space<vmem>>, vector<64x128xf32>,
    %c2_109 = arith.constant 2 : index
    %c2_110 = arith.constant 2 : index
    %c0_111 = arith.constant 0 : index
    %91 = vector.load %arg12[%c2_109, %c2_110, %c0_111] : memref<10x10x128xf32, #tpu.memory_space<vmem>>, vector<8x8x128xf32>
    %92 = vector.shape_cast %91 : vector<8x8x128xf32> to vector<64x128xf32>
    %c0_112 = arith.constant 0 : index
    %c1024 = arith.constant 1024 : index
    %93 = vector.load %arg13[%c0_112, %c1024] : memref<64x1152xf32, #tpu.memory_space<vmem>>, vector<64x128xf32>
    tpu.vector_store %arg13[%c0_112, %c1024], %92 {strides = array<i32>} : memref<64x1152xf32, #tpu.memory_space<vmem>>, vector<64x128xf32>,
    %c0_113 = arith.constant 0 : index
    %c0_114 = arith.constant 0 : index
    %94 = vector.load %arg13[%c0_113, %c0_114] : memref<64x1152xf32, #tpu.memory_space<vmem>>, vector<64x1152xf32>
    %95 = arith.truncf %94 : vector<64x1152xf32> to vector<64x1152xbf16>
    %c0_115 = arith.constant 0 : index
    %c0_116 = arith.constant 0 : index
    %96 = vector.load %arg5[%c0_115, %c0_116] : memref<1152x128xbf16, #tpu.memory_space<vmem>>, vector<1152x128xbf16>
    %cst_117 = arith.constant dense<0.000000e+00> : vector<64x128xf32>
    %97 = tpu.matmul %95, %96, %cst_117 {dimension_numbers = #tpu.dot_dimension_numbers<[1], [0], [0], [1], [0, 0, 1, 1], [], []>} : vector<64x1152xbf16>, vector<1152x128xbf16>, vector<64x128xf32> -> vector<64x128xf32>
    %c0_118 = arith.constant 0 : index
    %c0_119 = arith.constant 0 : index
    %98 = vector.load %arg6[%c0_118, %c0_119] : memref<1x128xf32, #tpu.memory_space<vmem>>, vector<1x128xf32>
    %99 = vector.broadcast %98 : vector<1x128xf32> to vector<64x128xf32>
    %100 = arith.mulf %97, %99 : vector<64x128xf32>
    %c0_120 = arith.constant 0 : index
    %c0_121 = arith.constant 0 : index
    %101 = vector.load %arg7[%c0_120, %c0_121] : memref<1x128xf32, #tpu.memory_space<vmem>>, vector<1x128xf32>
    %102 = vector.broadcast %101 : vector<1x128xf32> to vector<64x128xf32>
    %103 = arith.addf %100, %102 : vector<64x128xf32>
    %cst_122 = arith.constant 0.000000e+00 : f32
    %104 = vector.broadcast %cst_122 : f32 to vector<64x128xf32>
    %105 = arith.maximumf %103, %104 : vector<64x128xf32>
    %c0_123 = arith.constant 0 : index
    %c0_124 = arith.constant 0 : index
    %c0_125 = arith.constant 0 : index
    %106 = vector.load %arg8[%c0_123, %c0_124, %c0_125] : memref<1x64x128xf32, #tpu.memory_space<vmem>>, vector<1x64x128xf32>
    %107 = vector.shape_cast %106 : vector<1x64x128xf32> to vector<64x128xf32>
    %108 = vector.shape_cast %105 : vector<64x128xf32> to vector<1x64x128xf32>
    tpu.vector_store %arg8[%c0_123, %c0_124, %c0_125], %108 {strides = array<i32>} : memref<1x64x128xf32, #tpu.memory_space<vmem>>, vector<1x64x128xf32>,
    return
  }
  func.func @transform_0(%arg0: i32) -> (i32, i32, i32, i32) {
    %c0_i32 = arith.constant 0 : i32
    %c0_i32_0 = arith.constant 0 : i32
    %c0_i32_1 = arith.constant 0 : i32
    %c0_i32_2 = arith.constant 0 : i32
    return %arg0, %c0_i32, %c0_i32_0, %c0_i32_1 : i32, i32, i32, i32
  }
  func.func @transform_1(%arg0: i32) -> (i32, i32) {
    %c0_i32 = arith.constant 0 : i32
    %c0_i32_0 = arith.constant 0 : i32
    %c0_i32_1 = arith.constant 0 : i32
    return %c0_i32, %c0_i32_0 : i32, i32
  }
  func.func @transform_2(%arg0: i32) -> (i32, i32) {
    %c0_i32 = arith.constant 0 : i32
    %c0_i32_0 = arith.constant 0 : i32
    %c0_i32_1 = arith.constant 0 : i32
    return %c0_i32, %c0_i32_0 : i32, i32
  }
  func.func @transform_3(%arg0: i32) -> (i32, i32) {
    %c0_i32 = arith.constant 0 : i32
    %c0_i32_0 = arith.constant 0 : i32
    %c0_i32_1 = arith.constant 0 : i32
    return %c0_i32, %c0_i32_0 : i32, i32
  }
  func.func @transform_4(%arg0: i32) -> (i32, i32) {
    %c0_i32 = arith.constant 0 : i32
    %c0_i32_0 = arith.constant 0 : i32
    %c0_i32_1 = arith.constant 0 : i32
    return %c0_i32, %c0_i32_0 : i32, i32
  }
  func.func @transform_5(%arg0: i32) -> (i32, i32) {
    %c0_i32 = arith.constant 0 : i32
    %c0_i32_0 = arith.constant 0 : i32
    %c0_i32_1 = arith.constant 0 : i32
    return %c0_i32, %c0_i32_0 : i32, i32
  }
  func.func @transform_6(%arg0: i32) -> (i32, i32) {
    %c0_i32 = arith.constant 0 : i32
    %c0_i32_0 = arith.constant 0 : i32
    %c0_i32_1 = arith.constant 0 : i32
    return %c0_i32, %c0_i32_0 : i32, i32
  }
  func.func @transform_7(%arg0: i32) -> (i32, i32, i32) {
    %c0_i32 = arith.constant 0 : i32
    %c0_i32_0 = arith.constant 0 : i32
    %c0_i32_1 = arith.constant 0 : i32
    return %arg0, %c0_i32, %c0_i32_0 : i32, i32, i32
  }
}

</mosaic_0001>

<llo_original>
// kernel: down_pallas.1
$region0: #{down_pallas.1}
  #allocation0 [shape = 'u32[]', space=smem, size = 0x4, offset = 0x4, fixed_abs, tag = 'smem constant byte address 0x4 - core index']
  #allocation1 [shape = 'u32[144,128]{1,0:T(1,128)}', space=vmem, size = 0x12000, scoped, tag = 'internal scratch']
  #allocation2 [shape = 'f32[16,8,4]{2,1,0:T(8,128)}', space=vmem, size = 0x10000, scoped, tag = 'scratch operand']
  #allocation3 [shape = 'f32[10,10,4]{2,1,0:T(8,128)}', space=vmem, size = 0x14000, scoped, tag = 'scratch operand']
  #allocation4 [shape = 'f32[64,36]{1,0:T(8,128)}', space=vmem, size = 0x8000, scoped, tag = 'scratch operand']
  #allocation5 [shape = 'f32[10,10,128]{2,1,0:T(8,128)}', space=vmem, size = 0x14000, scoped, tag = 'scratch operand']
  #allocation6 [shape = 'f32[64,1152]{1,0:T(8,128)}', space=vmem, size = 0x48000, scoped, tag = 'scratch operand']
  %s0 = inlined_call_operand.vmem [shape: f32[2,16,8,8], index: 0, kind: input, shape index: {}]
  %s1 = inlined_call_operand.vmem [shape: bf16[36,128], index: 1, kind: input, shape index: {}]
  %s2 = inlined_call_operand.vmem [shape: f32[1,128], index: 2, kind: input, shape index: {}]
  %s3 = inlined_call_operand.vmem [shape: f32[1,128], index: 3, kind: input, shape index: {}]
  %s4 = inlined_call_operand.vmem [shape: bf16[1152,128], index: 4, kind: input, shape index: {}]
  %s5 = inlined_call_operand.vmem [shape: f32[1,128], index: 5, kind: input, shape index: {}]
  %s6 = inlined_call_operand.vmem [shape: f32[1,128], index: 6, kind: input, shape index: {}]
  %s7 = inlined_call_operand.vmem [shape: f32[2,64,128], index: 7, kind: output, shape index: {}]
  %s8 = sld [smem:[#allocation0]]
  $region61: #{down_pallas.1} parent=0
    _
  %s10 = ssub.s32 1, %s8
  %s11 = scalar_select 0, %s10, %s8
  loop: start=0, step=1, limit=4
  $region2: #{down_pallas.1} parent=0 // loop_pre_header
    _
  $region3: #{down_pallas.1} parent=0 // loop_header
    %s13 = sphi 0, %s17
    %p14 = scmp.ge.s32.totalorder %s13, 4
    %s23 = sphi 0, %s25
    %s26 = sphi 0, %s23
    %s27 = sphi 0, %s26
    %s43 = sphi 0, %s27
    %s47 = sphi 0, %s47
    %s49 = sphi 0, %s47
    %s50 = sphi 0, %s49
    %s64 = sphi 0, %s50
    %s68 = sphi 0, %s68
    %s70 = sphi 0, %s68
    %s71 = sphi 0, %s70
    %s85 = sphi 0, %s71
    %s89 = sphi 0, %s89
    %s91 = sphi 0, %s89
    %s92 = sphi 0, %s91
    %s106 = sphi 0, %s92
    %s110 = sphi 0, %s110
    %s112 = sphi 0, %s110
    %s113 = sphi 0, %s112
    %s127 = sphi 0, %s113
    %s131 = sphi 0, %s131
    %s133 = sphi 0, %s131
    %s134 = sphi 0, %s133
    %s148 = sphi 0, %s134
    %s152 = sphi 0, %s152
    %s154 = sphi 0, %s152
    %s155 = sphi 0, %s154
    %s169 = sphi 0, %s155
    %s175 = sphi 0, %s177
    %s178 = sphi 0, %s175
    %s179 = sphi 0, %s178
    %s195 = sphi 0, %s179
  $region4: #{down_pallas.1} parent=0 // loop_header_branch
    %16 = sbr.rel (%p14) target = $region8
  $region5: #{down_pallas.1} parent=0 // loop_body
    %s18 = ssub.s32 %s13, 1
    %s19 = ssub.s32 %s13, 2
    %s20 = sadd.s32 %s13, 1
    %s21 = ssub.s32 %s13, %s20
    %p22 = scmp.eq.s32.totalorder %s21, 0
    %s24 = sadd.s32 %s23, 1
    %s25 = scalar_select %p22, %s23, %s24
    %p28 = pneg %p22
    %p29 = scmp.eq.s32.totalorder %s13, 1
    %p30 = por %p28, %p29
    %p31 = scmp.ne.s32.totalorder %s23, %s26
    %p32 = scmp.eq.s32.totalorder %s13, 0
    %p33 = por %p31, %p32
    %p34 = scmp.ne.s32.totalorder %s23, %s26
    %p35 = scmp.eq.s32.totalorder %s18, 1
    %p36 = por %p34, %p35
    %p37 = scmp.ne.s32.totalorder %s26, %s27
    %p38 = scmp.eq.s32.totalorder %s18, 0
    %p39 = por %p37, %p38
    %p40 = scmp.ne.s32.totalorder %s26, %s27
    %p41 = scmp.eq.s32.totalorder %s19, 1
    %p42 = por %p40, %p41
    %p44 = scmp.ne.s32.totalorder %s27, %s43
    %p45 = scmp.eq.s32.totalorder %s19, 0
    %p46 = por %p44, %p45
    %s48 = sadd.s32 %s47, 1
    %p51 = scmp.eq.s32.totalorder %s13, 1
    %p52 = scmp.ne.s32.totalorder %s47, %s49
    %p53 = scmp.eq.s32.totalorder %s13, 0
    %p54 = por %p52, %p53
    %p55 = scmp.ne.s32.totalorder %s47, %s49
    %p56 = scmp.eq.s32.totalorder %s18, 1
    %p57 = por %p55, %p56
    %p58 = scmp.ne.s32.totalorder %s49, %s50
    %p59 = scmp.eq.s32.totalorder %s18, 0
    %p60 = por %p58, %p59
    %p61 = scmp.ne.s32.totalorder %s49, %s50
    %p62 = scmp.eq.s32.totalorder %s19, 1
    %p63 = por %p61, %p62
    %p65 = scmp.ne.s32.totalorder %s50, %s64
    %p66 = scmp.eq.s32.totalorder %s19, 0
    %p67 = por %p65, %p66
    %s69 = sadd.s32 %s68, 1
    %p72 = scmp.eq.s32.totalorder %s13, 1
    %p73 = scmp.ne.s32.totalorder %s68, %s70
    %p74 = scmp.eq.s32.totalorder %s13, 0
    %p75 = por %p73, %p74
    %p76 = scmp.ne.s32.totalorder %s68, %s70
    %p77 = scmp.eq.s32.totalorder %s18, 1
    %p78 = por %p76, %p77
    %p79 = scmp.ne.s32.totalorder %s70, %s71
    %p80 = scmp.eq.s32.totalorder %s18, 0
    %p81 = por %p79, %p80
    %p82 = scmp.ne.s32.totalorder %s70, %s71
    %p83 = scmp.eq.s32.totalorder %s19, 1
    %p84 = por %p82, %p83
    %p86 = scmp.ne.s32.totalorder %s71, %s85
    %p87 = scmp.eq.s32.totalorder %s19, 0
    %p88 = por %p86, %p87
    %s90 = sadd.s32 %s89, 1
    %p93 = scmp.eq.s32.totalorder %s13, 1
    %p94 = scmp.ne.s32.totalorder %s89, %s91
    %p95 = scmp.eq.s32.totalorder %s13, 0
    %p96 = por %p94, %p95
    %p97 = scmp.ne.s32.totalorder %s89, %s91
    %p98 = scmp.eq.s32.totalorder %s18, 1
    %p99 = por %p97, %p98
    %p100 = scmp.ne.s32.totalorder %s91, %s92
    %p101 = scmp.eq.s32.totalorder %s18, 0
    %p102 = por %p100, %p101
    %p103 = scmp.ne.s32.totalorder %s91, %s92
    %p104 = scmp.eq.s32.totalorder %s19, 1
    %p105 = por %p103, %p104
    %p107 = scmp.ne.s32.totalorder %s92, %s106
    %p108 = scmp.eq.s32.totalorder %s19, 0
    %p109 = por %p107, %p108
    %s111 = sadd.s32 %s110, 1
    %p114 = scmp.eq.s32.totalorder %s13, 1
    %p115 = scmp.ne.s32.totalorder %s110, %s112
    %p116 = scmp.eq.s32.totalorder %s13, 0
    %p117 = por %p115, %p116
    %p118 = scmp.ne.s32.totalorder %s110, %s112
    %p119 = scmp.eq.s32.totalorder %s18, 1
    %p120 = por %p118, %p119
    %p121 = scmp.ne.s32.totalorder %s112, %s113
    %p122 = scmp.eq.s32.totalorder %s18, 0
    %p123 = por %p121, %p122
    %p124 = scmp.ne.s32.totalorder %s112, %s113
    %p125 = scmp.eq.s32.totalorder %s19, 1
    %p126 = por %p124, %p125
    %p128 = scmp.ne.s32.totalorder %s113, %s127
    %p129 = scmp.eq.s32.totalorder %s19, 0
    %p130 = por %p128, %p129
    %s132 = sadd.s32 %s131, 1
    %p135 = scmp.eq.s32.totalorder %s13, 1
    %p136 = scmp.ne.s32.totalorder %s131, %s133
    %p137 = scmp.eq.s32.totalorder %s13, 0
    %p138 = por %p136, %p137
    %p139 = scmp.ne.s32.totalorder %s131, %s133
    %p140 = scmp.eq.s32.totalorder %s18, 1
    %p141 = por %p139, %p140
    %p142 = scmp.ne.s32.totalorder %s133, %s134
    %p143 = scmp.eq.s32.totalorder %s18, 0
    %p144 = por %p142, %p143
    %p145 = scmp.ne.s32.totalorder %s133, %s134
    %p146 = scmp.eq.s32.totalorder %s19, 1
    %p147 = por %p145, %p146
    %p149 = scmp.ne.s32.totalorder %s134, %s148
    %p150 = scmp.eq.s32.totalorder %s19, 0
    %p151 = por %p149, %p150
    %s153 = sadd.s32 %s152, 1
    %p156 = scmp.eq.s32.totalorder %s13, 1
    %p157 = scmp.ne.s32.totalorder %s152, %s154
    %p158 = scmp.eq.s32.totalorder %s13, 0
    %p159 = por %p157, %p158
    %p160 = scmp.ne.s32.totalorder %s152, %s154
    %p161 = scmp.eq.s32.totalorder %s18, 1
    %p162 = por %p160, %p161
    %p163 = scmp.ne.s32.totalorder %s154, %s155
    %p164 = scmp.eq.s32.totalorder %s18, 0
    %p165 = por %p163, %p164
    %p166 = scmp.ne.s32.totalorder %s154, %s155
    %p167 = scmp.eq.s32.totalorder %s19, 1
    %p168 = por %p166, %p167
    %p170 = scmp.ne.s32.totalorder %s155, %s169
    %p171 = scmp.eq.s32.totalorder %s19, 0
    %p172 = por %p170, %p171
    %s173 = ssub.s32 %s13, %s20
    %p174 = scmp.eq.s32.totalorder %s173, 0
    %s176 = sadd.s32 %s175, 1
    %s177 = scalar_select %p174, %s175, %s176
    %p180 = pneg %p174
    %p181 = scmp.eq.s32.totalorder %s13, 1
    %p182 = por %p180, %p181
    %p183 = scmp.ne.s32.totalorder %s175, %s178
    %p184 = scmp.eq.s32.totalorder %s13, 0
    %p185 = por %p183, %p184
    %p186 = scmp.ne.s32.totalorder %s175, %s178
    %p187 = scmp.eq.s32.totalorder %s18, 1
    %p188 = por %p186, %p187
    %p189 = scmp.ne.s32.totalorder %s178, %s179
    %p190 = scmp.eq.s32.totalorder %s18, 0
    %p191 = por %p189, %p190
    %p192 = scmp.ne.s32.totalorder %s178, %s179
    %p193 = scmp.eq.s32.totalorder %s19, 1
    %p194 = por %p192, %p193
    %p196 = scmp.ne.s32.totalorder %s179, %s195
    %p197 = scmp.eq.s32.totalorder %s19, 0
    %p198 = por %p196, %p197
    %p199 = scmp.le.s32.totalorder 1, %s13
    %p200 = scmp.lt.s32.totalorder %s13, 3
    %p201 = pnand %p199, %p200
    %p202 = pneg %p201
    // Predicated region
    $region9: #{down_pallas.1} parent=5 // pred_check
      _
    $region10: #{down_pallas.1} parent=5 // pred_check_branch
      %204 = sbr.rel (%p201) target = $region12
    $region11: #{down_pallas.1} parent=5 // pred_region
      %s205 = ssub.s32 %s13, 1
      // Predicated region
      $region13: #{down_pallas.1} parent=11 // pred_check
        %p206 = pneg %p60
      $region14: #{down_pallas.1} parent=11 // pred_check_branch
        %208 = sbr.rel (%p206) target = $region16
      $region15: #{down_pallas.1} parent=11 // pred_region
        _
      $region16: #{down_pallas.1} parent=11 // pred_fallthru
        _
      // Predicated region
      $region17: #{down_pallas.1} parent=11 // pred_check
        %p209 = pneg %p81
      $region18: #{down_pallas.1} parent=11 // pred_check_branch
        %211 = sbr.rel (%p209) target = $region20
      $region19: #{down_pallas.1} parent=11 // pred_region
        _
      $region20: #{down_pallas.1} parent=11 // pred_fallthru
        _
      // Predicated region
      $region21: #{down_pallas.1} parent=11 // pred_check
        %p212 = pneg %p102
      $region22: #{down_pallas.1} parent=11 // pred_check_branch
        %214 = sbr.rel (%p212) target = $region24
      $region23: #{down_pallas.1} parent=11 // pred_region
        _
      $region24: #{down_pallas.1} parent=11 // pred_fallthru
        _
      // Predicated region
      $region25: #{down_pallas.1} parent=11 // pred_check
        %p215 = pneg %p123
      $region26: #{down_pallas.1} parent=11 // pred_check_branch
        %217 = sbr.rel (%p215) target = $region28
      $region27: #{down_pallas.1} parent=11 // pred_region
        _
      $region28: #{down_pallas.1} parent=11 // pred_fallthru
        _
      // Predicated region
      $region29: #{down_pallas.1} parent=11 // pred_check
        %p218 = pneg %p144
      $region30: #{down_pallas.1} parent=11 // pred_check_branch
        %220 = sbr.rel (%p218) target = $region32
      $region31: #{down_pallas.1} parent=11 // pred_region
        _
      $region32: #{down_pallas.1} parent=11 // pred_fallthru
        _
      // Predicated region
      $region33: #{down_pallas.1} parent=11 // pred_check
        %p221 = pneg %p165
      $region34: #{down_pallas.1} parent=11 // pred_check_branch
        %223 = sbr.rel (%p221) target = $region36
      $region35: #{down_pallas.1} parent=11 // pred_region
        _
      $region36: #{down_pallas.1} parent=11 // pred_fallthru
        _
    $region12: #{down_pallas.1} parent=5 // pred_fallthru
      _
    %p224 = scmp.lt.s32.totalorder %s13, 2
    // Predicated region
    $region37: #{down_pallas.1} parent=5 // pred_check
      %p225 = pneg %p224
    $region38: #{down_pallas.1} parent=5 // pred_check_branch
      %227 = sbr.rel (%p225) target = $region40
    $region39: #{down_pallas.1} parent=5 // pred_region
      // Predicated region
      $region41: #{down_pallas.1} parent=39 // pred_check
        %p228 = pneg %p33
      $region42: #{down_pallas.1} parent=39 // pred_check_branch
        %230 = sbr.rel (%p228) target = $region44
      $region43: #{down_pallas.1} parent=39 // pred_region
        %p231 = scmp.lt.s32.totalorder %s13, 1
        %s232 = scalar_select %p231, %s13, 1
        %s233 = smul.addr %s232, 16
        %s234 = smul.addr %s233, 8
        %s235 = scalar_lea.vmem %s0, %s234
      $region44: #{down_pallas.1} parent=39 // pred_fallthru
        _
    $region40: #{down_pallas.1} parent=5 // pred_fallthru
      _
    %p236 = scmp.le.s32.totalorder 1, %s13
    %p237 = scmp.lt.s32.totalorder %s13, 3
    %p238 = pnand %p236, %p237
    %p239 = pneg %p238
    // Predicated region
    $region45: #{down_pallas.1} parent=5 // pred_check
      _
    $region46: #{down_pallas.1} parent=5 // pred_check_branch
      %241 = sbr.rel (%p238) target = $region48
    $region47: #{down_pallas.1} parent=5 // pred_region
      %s242 = ssub.s32 %s13, 1
      %p243 = scmp.lt.s32.totalorder %s18, 1
      %s244 = scalar_select %p243, %s18, 1
      %s245 = smul.addr %s244, 16
      %s246 = smul.addr %s245, 8
      %s247 = scalar_lea.vmem %s0, %s246
      %p248 = pneg %p39
      %p249 = pneg %p36
      %p250 = pneg %p60
      %p251 = pneg %p57
      %p252 = pneg %p81
      %p253 = pneg %p78
      %p254 = pneg %p102
      %p255 = pneg %p99
      %p256 = pneg %p123
      %p257 = pneg %p120
      %p258 = pneg %p144
      %p259 = pneg %p141
      %p260 = pneg %p165
      %p261 = pneg %p162
      %p262 = pneg %p191
      %p263 = pneg %p188
      %p264 = scmp.lt.s32.totalorder %s18, 1
      %s265 = scalar_select %p264, %s18, 1
      %s266 = smul.addr %s265, 8
      %s267 = smul.addr %s266, 8
      %s268 = scalar_lea.vmem %s7, %s267
      %p269 = scmp.lt.s32.totalorder %s18, 1
      %s270 = scalar_select %p269, %s18, 1
      %s271 = smul.addr %s270, 16
      %s272 = smul.addr %s271, 8
      %s273 = scalar_lea.vmem %s0, %s272
      %p274 = scmp.lt.s32.totalorder %s18, 1
      %s275 = scalar_select %p274, %s18, 1
      %s276 = smul.addr %s275, 8
      %s277 = smul.addr %s276, 8
      %s278 = scalar_lea.vmem %s7, %s277
      %v280 = vld [vmem:[%s273] sm:$0xff]
      %v281 = vld [vmem:[%s273 + $0x8] sm:$0xff]
      %v282 = vld [vmem:[%s273 + $0x10] sm:$0xff]
      %v283 = vld [vmem:[%s273 + $0x18] sm:$0xff]
      %v284 = vld [vmem:[%s273 + $0x20] sm:$0xff]
      %v285 = vld [vmem:[%s273 + $0x28] sm:$0xff]
      %v286 = vld [vmem:[%s273 + $0x30] sm:$0xff]
      %v287 = vld [vmem:[%s273 + $0x38] sm:$0xff]
      %v288 = vld [vmem:[%s273 + $0x40] sm:$0xff]
      %v289 = vld [vmem:[%s273 + $0x48] sm:$0xff]
      %v290 = vld [vmem:[%s273 + $0x50] sm:$0xff]
      %v291 = vld [vmem:[%s273 + $0x58] sm:$0xff]
      %v292 = vld [vmem:[%s273 + $0x60] sm:$0xff]
      %v293 = vld [vmem:[%s273 + $0x68] sm:$0xff]
      %v294 = vld [vmem:[%s273 + $0x70] sm:$0xff]
      %v295 = vld [vmem:[%s273 + $0x78] sm:$0xff]
      %312 = vrot.lane.b32.xlu0 %v280, 124
      %v313 = vpop.permute.xlu0 %312
      %314 = vrot.lane.b32.xlu0 %v281, 124
      %v315 = vpop.permute.xlu0 %314
      %316 = vrot.lane.b32.xlu0 %v282, 124
      %v317 = vpop.permute.xlu0 %316
      %318 = vrot.lane.b32.xlu0 %v283, 124
      %v319 = vpop.permute.xlu0 %318
      %320 = vrot.lane.b32.xlu0 %v284, 124
      %v321 = vpop.permute.xlu0 %320
      %322 = vrot.lane.b32.xlu0 %v285, 124
      %v323 = vpop.permute.xlu0 %322
      %324 = vrot.lane.b32.xlu0 %v286, 124
      %v325 = vpop.permute.xlu0 %324
      %326 = vrot.lane.b32.xlu0 %v287, 124
      %v327 = vpop.permute.xlu0 %326
      %328 = vrot.lane.b32.xlu0 %v288, 124
      %v329 = vpop.permute.xlu0 %328
      %330 = vrot.lane.b32.xlu0 %v289, 124
      %v331 = vpop.permute.xlu0 %330
      %332 = vrot.lane.b32.xlu0 %v290, 124
      %v333 = vpop.permute.xlu0 %332
      %334 = vrot.lane.b32.xlu0 %v291, 124
      %v335 = vpop.permute.xlu0 %334
      %336 = vrot.lane.b32.xlu0 %v292, 124
      %v337 = vpop.permute.xlu0 %336
      %338 = vrot.lane.b32.xlu0 %v293, 124
      %v339 = vpop.permute.xlu0 %338
      %340 = vrot.lane.b32.xlu0 %v294, 124
      %v341 = vpop.permute.xlu0 %340
      %342 = vrot.lane.b32.xlu0 %v295, 124
      %v343 = vpop.permute.xlu0 %342
      %v360 = vmax.f32 %v280, %v313
      %v361 = vmax.f32 %v281, %v315
      %v362 = vmax.f32 %v282, %v317
      %v363 = vmax.f32 %v283, %v319
      %v364 = vmax.f32 %v284, %v321
      %v365 = vmax.f32 %v285, %v323
      %v366 = vmax.f32 %v286, %v325
      %v367 = vmax.f32 %v287, %v327
      %v368 = vmax.f32 %v288, %v329
      %v369 = vmax.f32 %v289, %v331
      %v370 = vmax.f32 %v290, %v333
      %v371 = vmax.f32 %v291, %v335
      %v372 = vmax.f32 %v292, %v337
      %v373 = vmax.f32 %v293, %v339
      %v374 = vmax.f32 %v294, %v341
      %v375 = vmax.f32 %v295, %v343
      %vm376 = vcmask 31744
      %377 = vst.msk [vmem:[#allocation2] sm:$0xff] %vm376, %v360
      %378 = vst.msk [vmem:[#allocation2 + $0x8] sm:$0xff] %vm376, %v361
      %379 = vst.msk [vmem:[#allocation2 + $0x10] sm:$0xff] %vm376, %v362
      %380 = vst.msk [vmem:[#allocation2 + $0x18] sm:$0xff] %vm376, %v363
      %381 = vst.msk [vmem:[#allocation2 + $0x20] sm:$0xff] %vm376, %v364
      %382 = vst.msk [vmem:[#allocation2 + $0x28] sm:$0xff] %vm376, %v365
      %383 = vst.msk [vmem:[#allocation2 + $0x30] sm:$0xff] %vm376, %v366
      %384 = vst.msk [vmem:[#allocation2 + $0x38] sm:$0xff] %vm376, %v367
      %385 = vst.msk [vmem:[#allocation2 + $0x40] sm:$0xff] %vm376, %v368
      %386 = vst.msk [vmem:[#allocation2 + $0x48] sm:$0xff] %vm376, %v369
      %387 = vst.msk [vmem:[#allocation2 + $0x50] sm:$0xff] %vm376, %v370
      %388 = vst.msk [vmem:[#allocation2 + $0x58] sm:$0xff] %vm376, %v371
      %389 = vst.msk [vmem:[#allocation2 + $0x60] sm:$0xff] %vm376, %v372
      %390 = vst.msk [vmem:[#allocation2 + $0x68] sm:$0xff] %vm376, %v373
      %391 = vst.msk [vmem:[#allocation2 + $0x70] sm:$0xff] %vm376, %v374
      %392 = vst.msk [vmem:[#allocation2 + $0x78] sm:$0xff] %vm376, %v375
      %v393 = vld [vmem:[#allocation2 + $0x1] sm:$0x7f]
      %v394 = vld [vmem:[#allocation2 + $0x9] sm:$0x7f]
      %v395 = vld [vmem:[#allocation2 + $0x11] sm:$0x7f]
      %v396 = vld [vmem:[#allocation2 + $0x19] sm:$0x7f]
      %v397 = vld [vmem:[#allocation2 + $0x21] sm:$0x7f]
      %v398 = vld [vmem:[#allocation2 + $0x29] sm:$0x7f]
      %v399 = vld [vmem:[#allocation2 + $0x31] sm:$0x7f]
      %v400 = vld [vmem:[#allocation2 + $0x39] sm:$0x7f]
      %v401 = vld [vmem:[#allocation2 + $0x41] sm:$0x7f]
      %v402 = vld [vmem:[#allocation2 + $0x49] sm:$0x7f]
      %v403 = vld [vmem:[#allocation2 + $0x51] sm:$0x7f]
      %v404 = vld [vmem:[#allocation2 + $0x59] sm:$0x7f]
      %v405 = vld [vmem:[#allocation2 + $0x61] sm:$0x7f]
      %v406 = vld [vmem:[#allocation2 + $0x69] sm:$0x7f]
      %v407 = vld [vmem:[#allocation2 + $0x71] sm:$0x7f]
      %v408 = vld [vmem:[#allocation2 + $0x79] sm:$0x7f]
      %v409 = vmax.f32 %v393, %v313
      %v410 = vmax.f32 %v394, %v315
      %v411 = vmax.f32 %v395, %v317
      %v412 = vmax.f32 %v396, %v319
      %v413 = vmax.f32 %v397, %v321
      %v414 = vmax.f32 %v398, %v323
      %v415 = vmax.f32 %v399, %v325
      %v416 = vmax.f32 %v400, %v327
      %v417 = vmax.f32 %v401, %v329
      %v418 = vmax.f32 %v402, %v331
      %v419 = vmax.f32 %v403, %v333
      %v420 = vmax.f32 %v404, %v335
      %v421 = vmax.f32 %v405, %v337
      %v422 = vmax.f32 %v406, %v339
      %v423 = vmax.f32 %v407, %v341
      %v424 = vmax.f32 %v408, %v343
      %vm425 = vcmask 30720
      %426 = vst.msk [vmem:[#allocation2 + $0x1] sm:$0x7f] %vm425, %v409
      %427 = vst.msk [vmem:[#allocation2 + $0x9] sm:$0x7f] %vm425, %v410
      %428 = vst.msk [vmem:[#allocation2 + $0x11] sm:$0x7f] %vm425, %v411
      %429 = vst.msk [vmem:[#allocation2 + $0x19] sm:$0x7f] %vm425, %v412
      %430 = vst.msk [vmem:[#allocation2 + $0x21] sm:$0x7f] %vm425, %v413
      %431 = vst.msk [vmem:[#allocation2 + $0x29] sm:$0x7f] %vm425, %v414
      %432 = vst.msk [vmem:[#allocation2 + $0x31] sm:$0x7f] %vm425, %v415
      %433 = vst.msk [vmem:[#allocation2 + $0x39] sm:$0x7f] %vm425, %v416
      %434 = vst.msk [vmem:[#allocation2 + $0x41] sm:$0x7f] %vm425, %v417
      %435 = vst.msk [vmem:[#allocation2 + $0x49] sm:$0x7f] %vm425, %v418
      %436 = vst.msk [vmem:[#allocation2 + $0x51] sm:$0x7f] %vm425, %v419
      %437 = vst.msk [vmem:[#allocation2 + $0x59] sm:$0x7f] %vm425, %v420
      %438 = vst.msk [vmem:[#allocation2 + $0x61] sm:$0x7f] %vm425, %v421
      %439 = vst.msk [vmem:[#allocation2 + $0x69] sm:$0x7f] %vm425, %v422
      %440 = vst.msk [vmem:[#allocation2 + $0x71] sm:$0x7f] %vm425, %v423
      %441 = vst.msk [vmem:[#allocation2 + $0x79] sm:$0x7f] %vm425, %v424
      %v442 = vld [vmem:[#allocation2] sm:$0xff]
      %v443 = vld [vmem:[#allocation2 + $0x8] sm:$0xff]
      %v444 = vld [vmem:[#allocation2 + $0x10] sm:$0xff]
      %v445 = vld [vmem:[#allocation2 + $0x18] sm:$0xff]
      %v446 = vld [vmem:[#allocation2 + $0x20] sm:$0xff]
      %v447 = vld [vmem:[#allocation2 + $0x28] sm:$0xff]
      %v448 = vld [vmem:[#allocation2 + $0x30] sm:$0xff]
      %v449 = vld [vmem:[#allocation2 + $0x38] sm:$0xff]
      %v450 = vld [vmem:[#allocation2 + $0x40] sm:$0xff]
      %v451 = vld [vmem:[#allocation2 + $0x48] sm:$0xff]
      %v452 = vld [vmem:[#allocation2 + $0x50] sm:$0xff]
      %v453 = vld [vmem:[#allocation2 + $0x58] sm:$0xff]
      %v454 = vld [vmem:[#allocation2 + $0x60] sm:$0xff]
      %v455 = vld [vmem:[#allocation2 + $0x68] sm:$0xff]
      %v456 = vld [vmem:[#allocation2 + $0x70] sm:$0xff]
      %v457 = vld [vmem:[#allocation2 + $0x78] sm:$0xff]
      %v458 = vmax.f32 %v442, %v443
      %v459 = vmax.f32 %v444, %v445
      %v460 = vmax.f32 %v446, %v447
      %v461 = vmax.f32 %v448, %v449
      %v462 = vmax.f32 %v450, %v451
      %v463 = vmax.f32 %v452, %v453
      %v464 = vmax.f32 %v454, %v455
      %v465 = vmax.f32 %v456, %v457
      %466 = vst.msk [vmem:[#allocation3] sm:$0xff] %vm376, 0.0
      %vm467 = vcmask 25600
      %468 = vst.msk [vmem:[#allocation3 + $0x8] sm:$0x3] %vm467, 0.0
      %469 = vst.msk [vmem:[#allocation3 + $0x10] sm:$0xff] %vm376, 0.0
      %470 = vst.msk [vmem:[#allocation3 + $0x18] sm:$0x3] %vm467, 0.0
      %471 = vst.msk [vmem:[#allocation3 + $0x20] sm:$0xff] %vm376, 0.0
      %472 = vst.msk [vmem:[#allocation3 + $0x28] sm:$0x3] %vm467, 0.0
      %473 = vst.msk [vmem:[#allocation3 + $0x30] sm:$0xff] %vm376, 0.0
      %474 = vst.msk [vmem:[#allocation3 + $0x38] sm:$0x3] %vm467, 0.0
      %475 = vst.msk [vmem:[#allocation3 + $0x40] sm:$0xff] %vm376, 0.0
      %476 = vst.msk [vmem:[#allocation3 + $0x48] sm:$0x3] %vm467, 0.0
      %477 = vst.msk [vmem:[#allocation3 + $0x50] sm:$0xff] %vm376, 0.0
      %478 = vst.msk [vmem:[#allocation3 + $0x58] sm:$0x3] %vm467, 0.0
      %479 = vst.msk [vmem:[#allocation3 + $0x60] sm:$0xff] %vm376, 0.0
      %480 = vst.msk [vmem:[#allocation3 + $0x68] sm:$0x3] %vm467, 0.0
      %481 = vst.msk [vmem:[#allocation3 + $0x70] sm:$0xff] %vm376, 0.0
      %482 = vst.msk [vmem:[#allocation3 + $0x78] sm:$0x3] %vm467, 0.0
      %483 = vst.msk [vmem:[#allocation3 + $0x80] sm:$0xff] %vm376, 0.0
      %484 = vst.msk [vmem:[#allocation3 + $0x88] sm:$0x3] %vm467, 0.0
      %485 = vst.msk [vmem:[#allocation3 + $0x90] sm:$0xff] %vm376, 0.0
      %486 = vst.msk [vmem:[#allocation3 + $0x98] sm:$0x3] %vm467, 0.0
      %s487 = scalar_lea.vmem [#allocation3], 16
      %488 = vst.msk [vmem:[%s487 + $0x1] sm:$0xff] %vm376, %v458
      %489 = vst.msk [vmem:[%s487 + $0x11] sm:$0xff] %vm376, %v459
      %490 = vst.msk [vmem:[%s487 + $0x21] sm:$0xff] %vm376, %v460
      %491 = vst.msk [vmem:[%s487 + $0x31] sm:$0xff] %vm376, %v461
      %492 = vst.msk [vmem:[%s487 + $0x41] sm:$0xff] %vm376, %v462
      %493 = vst.msk [vmem:[%s487 + $0x51] sm:$0xff] %vm376, %v463
      %494 = vst.msk [vmem:[%s487 + $0x61] sm:$0xff] %vm376, %v464
      %495 = vst.msk [vmem:[%s487 + $0x71] sm:$0xff] %vm376, %v465
      %v496 = vmax.f32 %v459, %v443
      %v497 = vmax.f32 %v460, %v445
      %v498 = vmax.f32 %v461, %v447
      %v499 = vmax.f32 %v462, %v449
      %v500 = vmax.f32 %v463, %v451
      %v501 = vmax.f32 %v464, %v453
      %v502 = vmax.f32 %v465, %v455
      %s503 = scalar_lea.vmem [#allocation3], 32
      %504 = vst.msk [vmem:[%s503 + $0x1] sm:$0xff] %vm376, %v496
      %505 = vst.msk [vmem:[%s503 + $0x11] sm:$0xff] %vm376, %v497
      %506 = vst.msk [vmem:[%s503 + $0x21] sm:$0xff] %vm376, %v498
      %507 = vst.msk [vmem:[%s503 + $0x31] sm:$0xff] %vm376, %v499
      %508 = vst.msk [vmem:[%s503 + $0x41] sm:$0xff] %vm376, %v500
      %509 = vst.msk [vmem:[%s503 + $0x51] sm:$0xff] %vm376, %v501
      %510 = vst.msk [vmem:[%s503 + $0x61] sm:$0xff] %vm376, %v502
      %v511 = vld [vmem:[#allocation3] sm:$0xff]
      %v512 = vld [vmem:[#allocation3 + $0x10] sm:$0xff]
      %v513 = vld [vmem:[#allocation3 + $0x20] sm:$0xff]
      %v514 = vld [vmem:[#allocation3 + $0x30] sm:$0xff]
      %v515 = vld [vmem:[#allocation3 + $0x40] sm:$0xff]
      %v516 = vld [vmem:[#allocation3 + $0x50] sm:$0xff]
      %v517 = vld [vmem:[#allocation3 + $0x60] sm:$0xff]
      %v518 = vld [vmem:[#allocation3 + $0x70] sm:$0xff]
      %519 = vst.msk [vmem:[#allocation4] sm:$0xff] %vm376, %v511
      %520 = vst.msk [vmem:[#allocation4 + $0x8] sm:$0xff] %vm376, %v512
      %521 = vst.msk [vmem:[#allocation4 + $0x10] sm:$0xff] %vm376, %v513
      %522 = vst.msk [vmem:[#allocation4 + $0x18] sm:$0xff] %vm376, %v514
      %523 = vst.msk [vmem:[#allocation4 + $0x20] sm:$0xff] %vm376, %v515
      %524 = vst.msk [vmem:[#allocation4 + $0x28] sm:$0xff] %vm376, %v516
      %525 = vst.msk [vmem:[#allocation4 + $0x30] sm:$0xff] %vm376, %v517
      %526 = vst.msk [vmem:[#allocation4 + $0x38] sm:$0xff] %vm376, %v518
      %v527 = vld [vmem:[#allocation3 + $0x1] sm:$0xff]
      %v528 = vld [vmem:[#allocation3 + $0x11] sm:$0xff]
      %v529 = vld [vmem:[#allocation3 + $0x21] sm:$0xff]
      %v530 = vld [vmem:[#allocation3 + $0x31] sm:$0xff]
      %v531 = vld [vmem:[#allocation3 + $0x41] sm:$0xff]
      %v532 = vld [vmem:[#allocation3 + $0x51] sm:$0xff]
      %v533 = vld [vmem:[#allocation3 + $0x61] sm:$0xff]
      %v534 = vld [vmem:[#allocation3 + $0x71] sm:$0xff]
      %543 = vrot.lane.b32.xlu0 %v527, 4
      %v544 = vpop.permute.xlu0 %543
      %545 = vrot.lane.b32.xlu0 %v528, 4
      %v546 = vpop.permute.xlu0 %545
      %547 = vrot.lane.b32.xlu0 %v529, 4
      %v548 = vpop.permute.xlu0 %547
      %549 = vrot.lane.b32.xlu0 %v530, 4
      %v550 = vpop.permute.xlu0 %549
      %551 = vrot.lane.b32.xlu0 %v531, 4
      %v552 = vpop.permute.xlu0 %551
      %553 = vrot.lane.b32.xlu0 %v532, 4
      %v554 = vpop.permute.xlu0 %553
      %555 = vrot.lane.b32.xlu0 %v533, 4
      %v556 = vpop.permute.xlu0 %555
      %557 = vrot.lane.b32.xlu0 %v534, 4
      %v558 = vpop.permute.xlu0 %557
      %vm567 = vcmask 64544
      %568 = vst.msk [vmem:[#allocation4] sm:$0xff] %vm567, %v544
      %569 = vst.msk [vmem:[#allocation4 + $0x8] sm:$0xff] %vm567, %v546
      %570 = vst.msk [vmem:[#allocation4 + $0x10] sm:$0xff] %vm567, %v548
      %571 = vst.msk [vmem:[#allocation4 + $0x18] sm:$0xff] %vm567, %v550
      %572 = vst.msk [vmem:[#allocation4 + $0x20] sm:$0xff] %vm567, %v552
      %573 = vst.msk [vmem:[#allocation4 + $0x28] sm:$0xff] %vm567, %v554
      %574 = vst.msk [vmem:[#allocation4 + $0x30] sm:$0xff] %vm567, %v556
      %575 = vst.msk [vmem:[#allocation4 + $0x38] sm:$0xff] %vm567, %v558
      %v576 = vld [vmem:[#allocation3 + $0x2] sm:$0xff]
      %v577 = vld [vmem:[#allocation3 + $0x12] sm:$0xff]
      %v578 = vld [vmem:[#allocation3 + $0x22] sm:$0xff]
      %v579 = vld [vmem:[#allocation3 + $0x32] sm:$0xff]
      %v580 = vld [vmem:[#allocation3 + $0x42] sm:$0xff]
      %v581 = vld [vmem:[#allocation3 + $0x52] sm:$0xff]
      %v582 = vld [vmem:[#allocation3 + $0x62] sm:$0xff]
      %v583 = vld [vmem:[#allocation3 + $0x72] sm:$0xff]
      %592 = vrot.lane.b32.xlu0 %v576, 8
      %v593 = vpop.permute.xlu0 %592
      %594 = vrot.lane.b32.xlu0 %v577, 8
      %v595 = vpop.permute.xlu0 %594
      %596 = vrot.lane.b32.xlu0 %v578, 8
      %v597 = vpop.permute.xlu0 %596
      %598 = vrot.lane.b32.xlu0 %v579, 8
      %v599 = vpop.permute.xlu0 %598
      %600 = vrot.lane.b32.xlu0 %v580, 8
      %v601 = vpop.permute.xlu0 %600
      %602 = vrot.lane.b32.xlu0 %v581, 8
      %v603 = vpop.permute.xlu0 %602
      %604 = vrot.lane.b32.xlu0 %v582, 8
      %v605 = vpop.permute.xlu0 %604
      %606 = vrot.lane.b32.xlu0 %v583, 8
      %v607 = vpop.permute.xlu0 %606
      %vm616 = vcmask 97344
      %617 = vst.msk [vmem:[#allocation4] sm:$0xff] %vm616, %v593
      %618 = vst.msk [vmem:[#allocation4 + $0x8] sm:$0xff] %vm616, %v595
      %619 = vst.msk [vmem:[#allocation4 + $0x10] sm:$0xff] %vm616, %v597
      %620 = vst.msk [vmem:[#allocation4 + $0x18] sm:$0xff] %vm616, %v599
      %621 = vst.msk [vmem:[#allocation4 + $0x20] sm:$0xff] %vm616, %v601
      %622 = vst.msk [vmem:[#allocation4 + $0x28] sm:$0xff] %vm616, %v603
      %623 = vst.msk [vmem:[#allocation4 + $0x30] sm:$0xff] %vm616, %v605
      %624 = vst.msk [vmem:[#allocation4 + $0x38] sm:$0xff] %vm616, %v607
      %v625 = vld [vmem:[%s487] sm:$0xff]
      %v626 = vld [vmem:[%s487 + $0x10] sm:$0xff]
      %v627 = vld [vmem:[%s487 + $0x20] sm:$0xff]
      %v628 = vld [vmem:[%s487 + $0x30] sm:$0xff]
      %v629 = vld [vmem:[%s487 + $0x40] sm:$0xff]
      %v630 = vld [vmem:[%s487 + $0x50] sm:$0xff]
      %v631 = vld [vmem:[%s487 + $0x60] sm:$0xff]
      %v632 = vld [vmem:[%s487 + $0x70] sm:$0xff]
      %641 = vrot.lane.b32.xlu0 %v625, 12
      %v642 = vpop.permute.xlu0 %641
      %643 = vrot.lane.b32.xlu0 %v626, 12
      %v644 = vpop.permute.xlu0 %643
      %645 = vrot.lane.b32.xlu0 %v627, 12
      %v646 = vpop.permute.xlu0 %645
      %647 = vrot.lane.b32.xlu0 %v628, 12
      %v648 = vpop.permute.xlu0 %647
      %649 = vrot.lane.b32.xlu0 %v629, 12
      %v650 = vpop.permute.xlu0 %649
      %651 = vrot.lane.b32.xlu0 %v630, 12
      %v652 = vpop.permute.xlu0 %651
      %653 = vrot.lane.b32.xlu0 %v631, 12
      %v654 = vpop.permute.xlu0 %653
      %655 = vrot.lane.b32.xlu0 %v632, 12
      %v656 = vpop.permute.xlu0 %655
      %vm665 = vcmask 130144
      %666 = vst.msk [vmem:[#allocation4] sm:$0xff] %vm665, %v642
      %667 = vst.msk [vmem:[#allocation4 + $0x8] sm:$0xff] %vm665, %v644
      %668 = vst.msk [vmem:[#allocation4 + $0x10] sm:$0xff] %vm665, %v646
      %669 = vst.msk [vmem:[#allocation4 + $0x18] sm:$0xff] %vm665, %v648
      %670 = vst.msk [vmem:[#allocation4 + $0x20] sm:$0xff] %vm665, %v650
      %671 = vst.msk [vmem:[#allocation4 + $0x28] sm:$0xff] %vm665, %v652
      %672 = vst.msk [vmem:[#allocation4 + $0x30] sm:$0xff] %vm665, %v654
      %673 = vst.msk [vmem:[#allocation4 + $0x38] sm:$0xff] %vm665, %v656
      %v674 = vld [vmem:[%s487 + $0x1] sm:$0xff]
      %v675 = vld [vmem:[%s487 + $0x11] sm:$0xff]
      %v676 = vld [vmem:[%s487 + $0x21] sm:$0xff]
      %v677 = vld [vmem:[%s487 + $0x31] sm:$0xff]
      %v678 = vld [vmem:[%s487 + $0x41] sm:$0xff]
      %v679 = vld [vmem:[%s487 + $0x51] sm:$0xff]
      %v680 = vld [vmem:[%s487 + $0x61] sm:$0xff]
      %v681 = vld [vmem:[%s487 + $0x71] sm:$0xff]
      %690 = vrot.lane.b32.xlu0 %v674, 16
      %v691 = vpop.permute.xlu0 %690
      %692 = vrot.lane.b32.xlu0 %v675, 16
      %v693 = vpop.permute.xlu0 %692
      %694 = vrot.lane.b32.xlu0 %v676, 16
      %v695 = vpop.permute.xlu0 %694
      %696 = vrot.lane.b32.xlu0 %v677, 16
      %v697 = vpop.permute.xlu0 %696
      %698 = vrot.lane.b32.xlu0 %v678, 16
      %v699 = vpop.permute.xlu0 %698
      %700 = vrot.lane.b32.xlu0 %v679, 16
      %v701 = vpop.permute.xlu0 %700
      %702 = vrot.lane.b32.xlu0 %v680, 16
      %v703 = vpop.permute.xlu0 %702
      %704 = vrot.lane.b32.xlu0 %v681, 16
      %v705 = vpop.permute.xlu0 %704
      %vm714 = vcmask 162944
      %715 = vst.msk [vmem:[#allocation4] sm:$0xff] %vm714, %v691
      %716 = vst.msk [vmem:[#allocation4 + $0x8] sm:$0xff] %vm714, %v693
      %717 = vst.msk [vmem:[#allocation4 + $0x10] sm:$0xff] %vm714, %v695
      %718 = vst.msk [vmem:[#allocation4 + $0x18] sm:$0xff] %vm714, %v697
      %719 = vst.msk [vmem:[#allocation4 + $0x20] sm:$0xff] %vm714, %v699
      %720 = vst.msk [vmem:[#allocation4 + $0x28] sm:$0xff] %vm714, %v701
      %721 = vst.msk [vmem:[#allocation4 + $0x30] sm:$0xff] %vm714, %v703
      %722 = vst.msk [vmem:[#allocation4 + $0x38] sm:$0xff] %vm714, %v705
      %v723 = vld [vmem:[%s487 + $0x2] sm:$0xff]
      %v724 = vld [vmem:[%s487 + $0x12] sm:$0xff]
      %v725 = vld [vmem:[%s487 + $0x22] sm:$0xff]
      %v726 = vld [vmem:[%s487 + $0x32] sm:$0xff]
      %v727 = vld [vmem:[%s487 + $0x42] sm:$0xff]
      %v728 = vld [vmem:[%s487 + $0x52] sm:$0xff]
      %v729 = vld [vmem:[%s487 + $0x62] sm:$0xff]
      %v730 = vld [vmem:[%s487 + $0x72] sm:$0xff]
      %739 = vrot.lane.b32.xlu0 %v723, 20
      %v740 = vpop.permute.xlu0 %739
      %741 = vrot.lane.b32.xlu0 %v724, 20
      %v742 = vpop.permute.xlu0 %741
      %743 = vrot.lane.b32.xlu0 %v725, 20
      %v744 = vpop.permute.xlu0 %743
      %745 = vrot.lane.b32.xlu0 %v726, 20
      %v746 = vpop.permute.xlu0 %745
      %747 = vrot.lane.b32.xlu0 %v727, 20
      %v748 = vpop.permute.xlu0 %747
      %749 = vrot.lane.b32.xlu0 %v728, 20
      %v750 = vpop.permute.xlu0 %749
      %751 = vrot.lane.b32.xlu0 %v729, 20
      %v752 = vpop.permute.xlu0 %751
      %753 = vrot.lane.b32.xlu0 %v730, 20
      %v754 = vpop.permute.xlu0 %753
      %vm763 = vcmask 195744
      %764 = vst.msk [vmem:[#allocation4] sm:$0xff] %vm763, %v740
      %765 = vst.msk [vmem:[#allocation4 + $0x8] sm:$0xff] %vm763, %v742
      %766 = vst.msk [vmem:[#allocation4 + $0x10] sm:$0xff] %vm763, %v744
      %767 = vst.msk [vmem:[#allocation4 + $0x18] sm:$0xff] %vm763, %v746
      %768 = vst.msk [vmem:[#allocation4 + $0x20] sm:$0xff] %vm763, %v748
      %769 = vst.msk [vmem:[#allocation4 + $0x28] sm:$0xff] %vm763, %v750
      %770 = vst.msk [vmem:[#allocation4 + $0x30] sm:$0xff] %vm763, %v752
      %771 = vst.msk [vmem:[#allocation4 + $0x38] sm:$0xff] %vm763, %v754
      %v772 = vld [vmem:[%s503] sm:$0xff]
      %v773 = vld [vmem:[%s503 + $0x10] sm:$0xff]
      %v774 = vld [vmem:[%s503 + $0x20] sm:$0xff]
      %v775 = vld [vmem:[%s503 + $0x30] sm:$0xff]
      %v776 = vld [vmem:[%s503 + $0x40] sm:$0xff]
      %v777 = vld [vmem:[%s503 + $0x50] sm:$0xff]
      %v778 = vld [vmem:[%s503 + $0x60] sm:$0xff]
      %v779 = vld [vmem:[%s503 + $0x70] sm:$0xff]
      %788 = vrot.lane.b32.xlu0 %v772, 24
      %v789 = vpop.permute.xlu0 %788
      %790 = vrot.lane.b32.xlu0 %v773, 24
      %v791 = vpop.permute.xlu0 %790
      %792 = vrot.lane.b32.xlu0 %v774, 24
      %v793 = vpop.permute.xlu0 %792
      %794 = vrot.lane.b32.xlu0 %v775, 24
      %v795 = vpop.permute.xlu0 %794
      %796 = vrot.lane.b32.xlu0 %v776, 24
      %v797 = vpop.permute.xlu0 %796
      %798 = vrot.lane.b32.xlu0 %v777, 24
      %v799 = vpop.permute.xlu0 %798
      %800 = vrot.lane.b32.xlu0 %v778, 24
      %v801 = vpop.permute.xlu0 %800
      %802 = vrot.lane.b32.xlu0 %v779, 24
      %v803 = vpop.permute.xlu0 %802
      %vm812 = vcmask 228544
      %813 = vst.msk [vmem:[#allocation4] sm:$0xff] %vm812, %v789
      %814 = vst.msk [vmem:[#allocation4 + $0x8] sm:$0xff] %vm812, %v791
      %815 = vst.msk [vmem:[#allocation4 + $0x10] sm:$0xff] %vm812, %v793
      %816 = vst.msk [vmem:[#allocation4 + $0x18] sm:$0xff] %vm812, %v795
      %817 = vst.msk [vmem:[#allocation4 + $0x20] sm:$0xff] %vm812, %v797
      %818 = vst.msk [vmem:[#allocation4 + $0x28] sm:$0xff] %vm812, %v799
      %819 = vst.msk [vmem:[#allocation4 + $0x30] sm:$0xff] %vm812, %v801
      %820 = vst.msk [vmem:[#allocation4 + $0x38] sm:$0xff] %vm812, %v803
      %v821 = vld [vmem:[%s503 + $0x1] sm:$0xff]
      %v822 = vld [vmem:[%s503 + $0x11] sm:$0xff]
      %v823 = vld [vmem:[%s503 + $0x21] sm:$0xff]
      %v824 = vld [vmem:[%s503 + $0x31] sm:$0xff]
      %v825 = vld [vmem:[%s503 + $0x41] sm:$0xff]
      %v826 = vld [vmem:[%s503 + $0x51] sm:$0xff]
      %v827 = vld [vmem:[%s503 + $0x61] sm:$0xff]
      %v828 = vld [vmem:[%s503 + $0x71] sm:$0xff]
      %837 = vrot.lane.b32.xlu0 %v821, 28
      %v838 = vpop.permute.xlu0 %837
      %839 = vrot.lane.b32.xlu0 %v822, 28
      %v840 = vpop.permute.xlu0 %839
      %841 = vrot.lane.b32.xlu0 %v823, 28
      %v842 = vpop.permute.xlu0 %841
      %843 = vrot.lane.b32.xlu0 %v824, 28
      %v844 = vpop.permute.xlu0 %843
      %845 = vrot.lane.b32.xlu0 %v825, 28
      %v846 = vpop.permute.xlu0 %845
      %847 = vrot.lane.b32.xlu0 %v826, 28
      %v848 = vpop.permute.xlu0 %847
      %849 = vrot.lane.b32.xlu0 %v827, 28
      %v850 = vpop.permute.xlu0 %849
      %851 = vrot.lane.b32.xlu0 %v828, 28
      %v852 = vpop.permute.xlu0 %851
      %vm861 = vcmask 261344
      %862 = vst.msk [vmem:[#allocation4] sm:$0xff] %vm861, %v838
      %863 = vst.msk [vmem:[#allocation4 + $0x8] sm:$0xff] %vm861, %v840
      %864 = vst.msk [vmem:[#allocation4 + $0x10] sm:$0xff] %vm861, %v842
      %865 = vst.msk [vmem:[#allocation4 + $0x18] sm:$0xff] %vm861, %v844
      %866 = vst.msk [vmem:[#allocation4 + $0x20] sm:$0xff] %vm861, %v846
      %867 = vst.msk [vmem:[#allocation4 + $0x28] sm:$0xff] %vm861, %v848
      %868 = vst.msk [vmem:[#allocation4 + $0x30] sm:$0xff] %vm861, %v850
      %869 = vst.msk [vmem:[#allocation4 + $0x38] sm:$0xff] %vm861, %v852
      %v870 = vld [vmem:[%s503 + $0x2] sm:$0xff]
      %v871 = vld [vmem:[%s503 + $0x12] sm:$0xff]
      %v872 = vld [vmem:[%s503 + $0x22] sm:$0xff]
      %v873 = vld [vmem:[%s503 + $0x32] sm:$0xff]
      %v874 = vld [vmem:[%s503 + $0x42] sm:$0xff]
      %v875 = vld [vmem:[%s503 + $0x52] sm:$0xff]
      %v876 = vld [vmem:[%s503 + $0x62] sm:$0xff]
      %v877 = vld [vmem:[%s503 + $0x72] sm:$0xff]
      %886 = vrot.lane.b32.xlu0 %v870, 32
      %v887 = vpop.permute.xlu0 %886
      %888 = vrot.lane.b32.xlu0 %v871, 32
      %v889 = vpop.permute.xlu0 %888
      %890 = vrot.lane.b32.xlu0 %v872, 32
      %v891 = vpop.permute.xlu0 %890
      %892 = vrot.lane.b32.xlu0 %v873, 32
      %v893 = vpop.permute.xlu0 %892
      %894 = vrot.lane.b32.xlu0 %v874, 32
      %v895 = vpop.permute.xlu0 %894
      %896 = vrot.lane.b32.xlu0 %v875, 32
      %v897 = vpop.permute.xlu0 %896
      %898 = vrot.lane.b32.xlu0 %v876, 32
      %v899 = vpop.permute.xlu0 %898
      %900 = vrot.lane.b32.xlu0 %v877, 32
      %v901 = vpop.permute.xlu0 %900
      %vm910 = vcmask 294144
      %911 = vst.msk [vmem:[#allocation4] sm:$0xff] %vm910, %v887
      %912 = vst.msk [vmem:[#allocation4 + $0x8] sm:$0xff] %vm910, %v889
      %913 = vst.msk [vmem:[#allocation4 + $0x10] sm:$0xff] %vm910, %v891
      %914 = vst.msk [vmem:[#allocation4 + $0x18] sm:$0xff] %vm910, %v893
      %915 = vst.msk [vmem:[#allocation4 + $0x20] sm:$0xff] %vm910, %v895
      %916 = vst.msk [vmem:[#allocation4 + $0x28] sm:$0xff] %vm910, %v897
      %917 = vst.msk [vmem:[#allocation4 + $0x30] sm:$0xff] %vm910, %v899
      %918 = vst.msk [vmem:[#allocation4 + $0x38] sm:$0xff] %vm910, %v901
      %v919 = vld [vmem:[#allocation4] sm:$0xff]
      %v920 = vld [vmem:[#allocation4 + $0x8] sm:$0xff]
      %v921 = vld [vmem:[#allocation4 + $0x10] sm:$0xff]
      %v922 = vld [vmem:[#allocation4 + $0x18] sm:$0xff]
      %v923 = vld [vmem:[#allocation4 + $0x20] sm:$0xff]
      %v924 = vld [vmem:[#allocation4 + $0x28] sm:$0xff]
      %v925 = vld [vmem:[#allocation4 + $0x30] sm:$0xff]
      %v926 = vld [vmem:[#allocation4 + $0x38] sm:$0xff]
      %v927 = vpack.c.bf16 %v920, %v919
      %v928 = vpack.c.bf16 %v922, %v921
      %v929 = vpack.c.bf16 %v924, %v923
      %v930 = vpack.c.bf16 %v926, %v925
      %v931 = vld [vmem:[%s1] sm:$0xf]
      %v932 = vld [vmem:[%s1 + $0x4] sm:$0xf]
      %v933 = vld [vmem:[%s1 + $0x8] sm:$0xf]
      %v934 = vld [vmem:[%s1 + $0xc] sm:$0xf]
      %v935 = vld [vmem:[%s1 + $0x10] sm:$0x3]
      %v941 = vunpack.c.l.b16 %v931
      %v942 = vunpack.c.l.b16 %v932
      %v943 = vunpack.c.l.b16 %v933
      %v944 = vunpack.c.l.b16 %v934
      %v945 = vunpack.c.l.b16 %v935
      %v946 = vpack.c.b16 %v942, %v941
      %v947 = vpack.c.b16 %v944, %v943
      %v948 = vpack.c.b16 %v945, %v945
      %vm951 = vcmask 293888
      %v953 = vsel %vm951, %v927, 0
      %v956 = vsel %vm951, %v928, 0
      %v959 = vsel %vm951, %v929, 0
      %v962 = vsel %vm951, %v930, 0
      %vm964 = vcmask 1041408
      %v966 = vsel %vm964, %v948, 0
      %968 = vmatprep.subr.bf16.mxu0 0
      %969 = vmatpush1.bf16.msra.mxu0 %v946
      %970 = vmatprep.subr.bf16.mxu0 0
      %971 = vmatpush1.bf16.msra.mxu0 %v947
      %972 = vmatprep.subr.bf16.mxu0 0
      %973 = vmatpush1.bf16.msra.mxu0 %v966
      %974 = vmatprep.subr.bf16.mxu0 0
      %975 = vmatpush1.bf16.msra.mxu0 0
      %976 = vmatprep.subr.bf16.mxu0 0
      %977 = vmatpush1.bf16.msra.mxu0 0
      %978 = vmatprep.subr.bf16.mxu0 0
      %979 = vmatpush1.bf16.msra.mxu0 0
      %980 = vmatprep.subr.bf16.mxu0 0
      %981 = vmatpush1.bf16.msra.mxu0 0
      %982 = vmatprep.subr.bf16.mxu0 0
      %983 = vmatpush1.bf16.msra.mxu0 0
      %984 = vmatprep.subr.bf16.mxu0 0
      %985 = vmatpush1.bf16.msra.mxu0 0
      %986 = vmatprep.subr.bf16.mxu0 0
      %987 = vmatpush1.bf16.msra.mxu0 0
      %988 = vmatprep.subr.bf16.mxu0 0
      %989 = vmatpush1.bf16.msra.mxu0 0
      %990 = vmatprep.subr.bf16.mxu0 0
      %991 = vmatpush1.bf16.msra.mxu0 0
      %992 = vmatprep.subr.bf16.mxu0 0
      %993 = vmatpush1.bf16.msra.mxu0 0
      %994 = vmatprep.subr.bf16.mxu0 0
      %995 = vmatpush1.bf16.msra.mxu0 0
      %996 = vmatprep.subr.bf16.mxu0 0
      %997 = vmatpush1.bf16.msra.mxu0 0
      %998 = vmatprep.subr.bf16.mxu0 0
      %999 = vmatpush1.bf16.msra.mxu0 0
      %1000 = vmatprep.mubr.bf16.mxu0 0
      %1001 = vmatmul.mubr.bf16.gmra.mrb[0].mxu0 %v953
      %v1002 = vpop.f32.mrb[0].mxu0
      %v1003 = vadd.f32 0.0, %v1002
      %v1004 = vpop.f32.mrb[0].mxu0
      %v1005 = vpop.f32.mrb[0].mxu0
      %v1006 = vadd.f32 0.0, %v1005
      %v1007 = vpop.f32.mrb[0].mxu0
      %1008 = vmatprep.mubr.bf16.mxu0 0
      %1009 = vmatmul.mubr.bf16.gmra.mrb[0].mxu0 %v956
      %v1010 = vpop.f32.mrb[0].mxu0
      %v1011 = vadd.f32 0.0, %v1010
      %v1012 = vpop.f32.mrb[0].mxu0
      %v1013 = vpop.f32.mrb[0].mxu0
      %v1014 = vadd.f32 0.0, %v1013
      %v1015 = vpop.f32.mrb[0].mxu0
      %1016 = vmatprep.mubr.bf16.mxu0 0
      %1017 = vmatmul.mubr.bf16.gmra.mrb[0].mxu0 %v959
      %v1018 = vpop.f32.mrb[0].mxu0
      %v1019 = vadd.f32 0.0, %v1018
      %v1020 = vpop.f32.mrb[0].mxu0
      %v1021 = vpop.f32.mrb[0].mxu0
      %v1022 = vadd.f32 0.0, %v1021
      %v1023 = vpop.f32.mrb[0].mxu0
      %1024 = vmatprep.mubr.bf16.mxu0 0
      %1025 = vmatmul.mubr.bf16.gmra.mrb[0].mxu0 %v962
      %v1026 = vpop.f32.mrb[0].mxu0
      %v1027 = vadd.f32 0.0, %v1026
      %v1028 = vpop.f32.mrb[0].mxu0
      %v1029 = vpop.f32.mrb[0].mxu0
      %v1030 = vadd.f32 0.0, %v1029
      %v1031 = vpop.f32.mrb[0].mxu0
      %1032 = vdwg.mxu0
      %v1033 = vld [vmem:[%s2] sm:$0x1]
      %v1035 = vlaneseq
      %v1036 = vshrl.u32 %v1035, 7
      %v1037 = vsub.s32 0, %v1036
      %v1038 = vrot.slane %v1033, %v1037
      %v1040 = vmul.f32 %v1003, %v1038
      %v1041 = vmul.f32 %v1006, %v1038
      %v1042 = vmul.f32 %v1011, %v1038
      %v1043 = vmul.f32 %v1014, %v1038
      %v1044 = vmul.f32 %v1019, %v1038
      %v1045 = vmul.f32 %v1022, %v1038
      %v1046 = vmul.f32 %v1027, %v1038
      %v1047 = vmul.f32 %v1030, %v1038
      %v1048 = vld [vmem:[%s3] sm:$0x1]
      %v1050 = vlaneseq
      %v1051 = vshrl.u32 %v1050, 7
      %v1052 = vsub.s32 0, %v1051
      %v1053 = vrot.slane %v1048, %v1052
      %v1055 = vadd.f32 %v1040, %v1053
      %v1056 = vadd.f32 %v1041, %v1053
      %v1057 = vadd.f32 %v1042, %v1053
      %v1058 = vadd.f32 %v1043, %v1053
      %v1059 = vadd.f32 %v1044, %v1053
      %v1060 = vadd.f32 %v1045, %v1053
      %v1061 = vadd.f32 %v1046, %v1053
      %v1062 = vadd.f32 %v1047, %v1053
      %v1063 = vmax.f32 %v1055, 0.0
      %v1064 = vmax.f32 %v1056, 0.0
      %v1065 = vmax.f32 %v1057, 0.0
      %v1066 = vmax.f32 %v1058, 0.0
      %v1067 = vmax.f32 %v1059, 0.0
      %v1068 = vmax.f32 %v1060, 0.0
      %v1069 = vmax.f32 %v1061, 0.0
      %v1070 = vmax.f32 %v1062, 0.0
      %1071 = vst [vmem:[#allocation5] sm:$0xff] 0.0
      %1072 = vst [vmem:[#allocation5 + $0x8] sm:$0x3] 0.0
      %1073 = vst [vmem:[#allocation5 + $0x10] sm:$0xff] 0.0
      %1074 = vst [vmem:[#allocation5 + $0x18] sm:$0x3] 0.0
      %1075 = vst [vmem:[#allocation5 + $0x20] sm:$0xff] 0.0
      %1076 = vst [vmem:[#allocation5 + $0x28] sm:$0x3] 0.0
      %1077 = vst [vmem:[#allocation5 + $0x30] sm:$0xff] 0.0
      %1078 = vst [vmem:[#allocation5 + $0x38] sm:$0x3] 0.0
      %1079 = vst [vmem:[#allocation5 + $0x40] sm:$0xff] 0.0
      %1080 = vst [vmem:[#allocation5 + $0x48] sm:$0x3] 0.0
      %1081 = vst [vmem:[#allocation5 + $0x50] sm:$0xff] 0.0
      %1082 = vst [vmem:[#allocation5 + $0x58] sm:$0x3] 0.0
      %1083 = vst [vmem:[#allocation5 + $0x60] sm:$0xff] 0.0
      %1084 = vst [vmem:[#allocation5 + $0x68] sm:$0x3] 0.0
      %1085 = vst [vmem:[#allocation5 + $0x70] sm:$0xff] 0.0
      %1086 = vst [vmem:[#allocation5 + $0x78] sm:$0x3] 0.0
      %1087 = vst [vmem:[#allocation5 + $0x80] sm:$0xff] 0.0
      %1088 = vst [vmem:[#allocation5 + $0x88] sm:$0x3] 0.0
      %1089 = vst [vmem:[#allocation5 + $0x90] sm:$0xff] 0.0
      %1090 = vst [vmem:[#allocation5 + $0x98] sm:$0x3] 0.0
      %s1091 = scalar_lea.vmem [#allocation5], 16
      %1092 = vst [vmem:[%s1091 + $0x1] sm:$0xff] %v1063
      %1093 = vst [vmem:[%s1091 + $0x11] sm:$0xff] %v1064
      %1094 = vst [vmem:[%s1091 + $0x21] sm:$0xff] %v1065
      %1095 = vst [vmem:[%s1091 + $0x31] sm:$0xff] %v1066
      %1096 = vst [vmem:[%s1091 + $0x41] sm:$0xff] %v1067
      %1097 = vst [vmem:[%s1091 + $0x51] sm:$0xff] %v1068
      %1098 = vst [vmem:[%s1091 + $0x61] sm:$0xff] %v1069
      %1099 = vst [vmem:[%s1091 + $0x71] sm:$0xff] %v1070
      %v1100 = vld [vmem:[#allocation5] sm:$0xff]
      %v1101 = vld [vmem:[#allocation5 + $0x10] sm:$0xff]
      %v1102 = vld [vmem:[#allocation5 + $0x20] sm:$0xff]
      %v1103 = vld [vmem:[#allocation5 + $0x30] sm:$0xff]
      %v1104 = vld [vmem:[#allocation5 + $0x40] sm:$0xff]
      %v1105 = vld [vmem:[#allocation5 + $0x50] sm:$0xff]
      %v1106 = vld [vmem:[#allocation5 + $0x60] sm:$0xff]
      %v1107 = vld [vmem:[#allocation5 + $0x70] sm:$0xff]
      %1108 = vst [vmem:[#allocation6] sm:$0xff] %v1100
      %1109 = vst [vmem:[#allocation6 + $0x48] sm:$0xff] %v1101
      %1110 = vst [vmem:[#allocation6 + $0x90] sm:$0xff] %v1102
      %1111 = vst [vmem:[#allocation6 + $0xd8] sm:$0xff] %v1103
      %1112 = vst [vmem:[#allocation6 + $0x120] sm:$0xff] %v1104
      %1113 = vst [vmem:[#allocation6 + $0x168] sm:$0xff] %v1105
      %1114 = vst [vmem:[#allocation6 + $0x1b0] sm:$0xff] %v1106
      %1115 = vst [vmem:[#allocation6 + $0x1f8] sm:$0xff] %v1107
      %v1116 = vld [vmem:[#allocation5 + $0x1] sm:$0xff]
      %v1117 = vld [vmem:[#allocation5 + $0x11] sm:$0xff]
      %v1118 = vld [vmem:[#allocation5 + $0x21] sm:$0xff]
      %v1119 = vld [vmem:[#allocation5 + $0x31] sm:$0xff]
      %v1120 = vld [vmem:[#allocation5 + $0x41] sm:$0xff]
      %v1121 = vld [vmem:[#allocation5 + $0x51] sm:$0xff]
      %v1122 = vld [vmem:[#allocation5 + $0x61] sm:$0xff]
      %v1123 = vld [vmem:[#allocation5 + $0x71] sm:$0xff]
      %1124 = vst [vmem:[#allocation6 + $0x8] sm:$0xff] %v1116
      %1125 = vst [vmem:[#allocation6 + $0x50] sm:$0xff] %v1117
      %1126 = vst [vmem:[#allocation6 + $0x98] sm:$0xff] %v1118
      %1127 = vst [vmem:[#allocation6 + $0xe0] sm:$0xff] %v1119
      %1128 = vst [vmem:[#allocation6 + $0x128] sm:$0xff] %v1120
      %1129 = vst [vmem:[#allocation6 + $0x170] sm:$0xff] %v1121
      %1130 = vst [vmem:[#allocation6 + $0x1b8] sm:$0xff] %v1122
      %1131 = vst [vmem:[#allocation6 + $0x200] sm:$0xff] %v1123
      %v1132 = vld [vmem:[#allocation5 + $0x2] sm:$0xff]
      %v1133 = vld [vmem:[#allocation5 + $0x12] sm:$0xff]
      %v1134 = vld [vmem:[#allocation5 + $0x22] sm:$0xff]
      %v1135 = vld [vmem:[#allocation5 + $0x32] sm:$0xff]
      %v1136 = vld [vmem:[#allocation5 + $0x42] sm:$0xff]
      %v1137 = vld [vmem:[#allocation5 + $0x52] sm:$0xff]
      %v1138 = vld [vmem:[#allocation5 + $0x62] sm:$0xff]
      %v1139 = vld [vmem:[#allocation5 + $0x72] sm:$0xff]
      %1140 = vst [vmem:[#allocation6 + $0x10] sm:$0xff] %v1132
      %1141 = vst [vmem:[#allocation6 + $0x58] sm:$0xff] %v1133
      %1142 = vst [vmem:[#allocation6 + $0xa0] sm:$0xff] %v1134
      %1143 = vst [vmem:[#allocation6 + $0xe8] sm:$0xff] %v1135
      %1144 = vst [vmem:[#allocation6 + $0x130] sm:$0xff] %v1136
      %1145 = vst [vmem:[#allocation6 + $0x178] sm:$0xff] %v1137
      %1146 = vst [vmem:[#allocation6 + $0x1c0] sm:$0xff] %v1138
      %1147 = vst [vmem:[#allocation6 + $0x208] sm:$0xff] %v1139
      %v1148 = vld [vmem:[%s1091] sm:$0xff]
      %v1149 = vld [vmem:[%s1091 + $0x10] sm:$0xff]
      %v1150 = vld [vmem:[%s1091 + $0x20] sm:$0xff]
      %v1151 = vld [vmem:[%s1091 + $0x30] sm:$0xff]
      %v1152 = vld [vmem:[%s1091 + $0x40] sm:$0xff]
      %v1153 = vld [vmem:[%s1091 + $0x50] sm:$0xff]
      %v1154 = vld [vmem:[%s1091 + $0x60] sm:$0xff]
      %v1155 = vld [vmem:[%s1091 + $0x70] sm:$0xff]
      %1156 = vst [vmem:[#allocation6 + $0x18] sm:$0xff] %v1148
      %1157 = vst [vmem:[#allocation6 + $0x60] sm:$0xff] %v1149
      %1158 = vst [vmem:[#allocation6 + $0xa8] sm:$0xff] %v1150
      %1159 = vst [vmem:[#allocation6 + $0xf0] sm:$0xff] %v1151
      %1160 = vst [vmem:[#allocation6 + $0x138] sm:$0xff] %v1152
      %1161 = vst [vmem:[#allocation6 + $0x180] sm:$0xff] %v1153
      %1162 = vst [vmem:[#allocation6 + $0x1c8] sm:$0xff] %v1154
      %1163 = vst [vmem:[#allocation6 + $0x210] sm:$0xff] %v1155
      %v1164 = vld [vmem:[%s1091 + $0x1] sm:$0xff]
      %v1165 = vld [vmem:[%s1091 + $0x11] sm:$0xff]
      %v1166 = vld [vmem:[%s1091 + $0x21] sm:$0xff]
      %v1167 = vld [vmem:[%s1091 + $0x31] sm:$0xff]
      %v1168 = vld [vmem:[%s1091 + $0x41] sm:$0xff]
      %v1169 = vld [vmem:[%s1091 + $0x51] sm:$0xff]
      %v1170 = vld [vmem:[%s1091 + $0x61] sm:$0xff]
      %v1171 = vld [vmem:[%s1091 + $0x71] sm:$0xff]
      %1172 = vst [vmem:[#allocation6 + $0x20] sm:$0xff] %v1164
      %1173 = vst [vmem:[#allocation6 + $0x68] sm:$0xff] %v1165
      %1174 = vst [vmem:[#allocation6 + $0xb0] sm:$0xff] %v1166
      %1175 = vst [vmem:[#allocation6 + $0xf8] sm:$0xff] %v1167
      %1176 = vst [vmem:[#allocation6 + $0x140] sm:$0xff] %v1168
      %1177 = vst [vmem:[#allocation6 + $0x188] sm:$0xff] %v1169
      %1178 = vst [vmem:[#allocation6 + $0x1d0] sm:$0xff] %v1170
      %1179 = vst [vmem:[#allocation6 + $0x218] sm:$0xff] %v1171
      %v1180 = vld [vmem:[%s1091 + $0x2] sm:$0xff]
      %v1181 = vld [vmem:[%s1091 + $0x12] sm:$0xff]
      %v1182 = vld [vmem:[%s1091 + $0x22] sm:$0xff]
      %v1183 = vld [vmem:[%s1091 + $0x32] sm:$0xff]
      %v1184 = vld [vmem:[%s1091 + $0x42] sm:$0xff]
      %v1185 = vld [vmem:[%s1091 + $0x52] sm:$0xff]
      %v1186 = vld [vmem:[%s1091 + $0x62] sm:$0xff]
      %v1187 = vld [vmem:[%s1091 + $0x72] sm:$0xff]
      %1188 = vst [vmem:[#allocation6 + $0x28] sm:$0xff] %v1180
      %1189 = vst [vmem:[#allocation6 + $0x70] sm:$0xff] %v1181
      %1190 = vst [vmem:[#allocation6 + $0xb8] sm:$0xff] %v1182
      %1191 = vst [vmem:[#allocation6 + $0x100] sm:$0xff] %v1183
      %1192 = vst [vmem:[#allocation6 + $0x148] sm:$0xff] %v1184
      %1193 = vst [vmem:[#allocation6 + $0x190] sm:$0xff] %v1185
      %1194 = vst [vmem:[#allocation6 + $0x1d8] sm:$0xff] %v1186
      %1195 = vst [vmem:[#allocation6 + $0x220] sm:$0xff] %v1187
      %s1196 = scalar_lea.vmem [#allocation5], 32
      %v1197 = vld [vmem:[%s1196] sm:$0xff]
      %v1198 = vld [vmem:[%s1196 + $0x10] sm:$0xff]
      %v1199 = vld [vmem:[%s1196 + $0x20] sm:$0xff]
      %v1200 = vld [vmem:[%s1196 + $0x30] sm:$0xff]
      %v1201 = vld [vmem:[%s1196 + $0x40] sm:$0xff]
      %v1202 = vld [vmem:[%s1196 + $0x50] sm:$0xff]
      %v1203 = vld [vmem:[%s1196 + $0x60] sm:$0xff]
      %v1204 = vld [vmem:[%s1196 + $0x70] sm:$0xff]
      %1205 = vst [vmem:[#allocation6 + $0x30] sm:$0xff] %v1197
      %1206 = vst [vmem:[#allocation6 + $0x78] sm:$0xff] %v1198
      %1207 = vst [vmem:[#allocation6 + $0xc0] sm:$0xff] %v1199
      %1208 = vst [vmem:[#allocation6 + $0x108] sm:$0xff] %v1200
      %1209 = vst [vmem:[#allocation6 + $0x150] sm:$0xff] %v1201
      %1210 = vst [vmem:[#allocation6 + $0x198] sm:$0xff] %v1202
      %1211 = vst [vmem:[#allocation6 + $0x1e0] sm:$0xff] %v1203
      %1212 = vst [vmem:[#allocation6 + $0x228] sm:$0xff] %v1204
      %v1213 = vld [vmem:[%s1196 + $0x1] sm:$0xff]
      %v1214 = vld [vmem:[%s1196 + $0x11] sm:$0xff]
      %v1215 = vld [vmem:[%s1196 + $0x21] sm:$0xff]
      %v1216 = vld [vmem:[%s1196 + $0x31] sm:$0xff]
      %v1217 = vld [vmem:[%s1196 + $0x41] sm:$0xff]
      %v1218 = vld [vmem:[%s1196 + $0x51] sm:$0xff]
      %v1219 = vld [vmem:[%s1196 + $0x61] sm:$0xff]
      %v1220 = vld [vmem:[%s1196 + $0x71] sm:$0xff]
      %1221 = vst [vmem:[#allocation6 + $0x38] sm:$0xff] %v1213
      %1222 = vst [vmem:[#allocation6 + $0x80] sm:$0xff] %v1214
      %1223 = vst [vmem:[#allocation6 + $0xc8] sm:$0xff] %v1215
      %1224 = vst [vmem:[#allocation6 + $0x110] sm:$0xff] %v1216
      %1225 = vst [vmem:[#allocation6 + $0x158] sm:$0xff] %v1217
      %1226 = vst [vmem:[#allocation6 + $0x1a0] sm:$0xff] %v1218
      %1227 = vst [vmem:[#allocation6 + $0x1e8] sm:$0xff] %v1219
      %1228 = vst [vmem:[#allocation6 + $0x230] sm:$0xff] %v1220
      %v1229 = vld [vmem:[%s1196 + $0x2] sm:$0xff]
      %v1230 = vld [vmem:[%s1196 + $0x12] sm:$0xff]
      %v1231 = vld [vmem:[%s1196 + $0x22] sm:$0xff]
      %v1232 = vld [vmem:[%s1196 + $0x32] sm:$0xff]
      %v1233 = vld [vmem:[%s1196 + $0x42] sm:$0xff]
      %v1234 = vld [vmem:[%s1196 + $0x52] sm:$0xff]
      %v1235 = vld [vmem:[%s1196 + $0x62] sm:$0xff]
      %v1236 = vld [vmem:[%s1196 + $0x72] sm:$0xff]
      %1237 = vst [vmem:[#allocation6 + $0x40] sm:$0xff] %v1229
      %1238 = vst [vmem:[#allocation6 + $0x88] sm:$0xff] %v1230
      %1239 = vst [vmem:[#allocation6 + $0xd0] sm:$0xff] %v1231
      %1240 = vst [vmem:[#allocation6 + $0x118] sm:$0xff] %v1232
      %1241 = vst [vmem:[#allocation6 + $0x160] sm:$0xff] %v1233
      %1242 = vst [vmem:[#allocation6 + $0x1a8] sm:$0xff] %v1234
      %1243 = vst [vmem:[#allocation6 + $0x1f0] sm:$0xff] %v1235
      %1244 = vst [vmem:[#allocation6 + $0x238] sm:$0xff] %v1236
      %v1245 = vld [vmem:[#allocation6] sm:$0xff]
      %v1246 = vld [vmem:[#allocation6 + $0x8] sm:$0xff]
      %v1247 = vld [vmem:[#allocation6 + $0x10] sm:$0xff]
      %v1248 = vld [vmem:[#allocation6 + $0x18] sm:$0xff]
      %v1249 = vld [vmem:[#allocation6 + $0x20] sm:$0xff]
      %v1250 = vld [vmem:[#allocation6 + $0x28] sm:$0xff]
      %v1251 = vld [vmem:[#allocation6 + $0x30] sm:$0xff]
      %v1252 = vld [vmem:[#allocation6 + $0x38] sm:$0xff]
      %v1253 = vld [vmem:[#allocation6 + $0x40] sm:$0xff]
      %v1254 = vld [vmem:[#allocation6 + $0x48] sm:$0xff]
      %v1255 = vld [vmem:[#allocation6 + $0x50] sm:$0xff]
      %v1256 = vld [vmem:[#allocation6 + $0x58] sm:$0xff]
      %v1257 = vld [vmem:[#allocation6 + $0x60] sm:$0xff]
      %v1258 = vld [vmem:[#allocation6 + $0x68] sm:$0xff]
      %v1259 = vld [vmem:[#allocation6 + $0x70] sm:$0xff]
      %v1260 = vld [vmem:[#allocation6 + $0x78] sm:$0xff]
      %v1261 = vld [vmem:[#allocation6 + $0x80] sm:$0xff]
      %v1262 = vld [vmem:[#allocation6 + $0x88] sm:$0xff]
      %v1263 = vld [vmem:[#allocation6 + $0x90] sm:$0xff]
      %v1264 = vld [vmem:[#allocation6 + $0x98] sm:$0xff]
      %v1265 = vld [vmem:[#allocation6 + $0xa0] sm:$0xff]
      %v1266 = vld [vmem:[#allocation6 + $0xa8] sm:$0xff]
      %v1267 = vld [vmem:[#allocation6 + $0xb0] sm:$0xff]
      %v1268 = vld [vmem:[#allocation6 + $0xb8] sm:$0xff]
      %v1269 = vld [vmem:[#allocation6 + $0xc0] sm:$0xff]
      %v1270 = vld [vmem:[#allocation6 + $0xc8] sm:$0xff]
      %v1271 = vld [vmem:[#allocation6 + $0xd0] sm:$0xff]
      %v1272 = vld [vmem:[#allocation6 + $0xd8] sm:$0xff]
      %v1273 = vld [vmem:[#allocation6 + $0xe0] sm:$0xff]
      %v1274 = vld [vmem:[#allocation6 + $0xe8] sm:$0xff]
      %v1275 = vld [vmem:[#allocation6 + $0xf0] sm:$0xff]
      %v1276 = vld [vmem:[#allocation6 + $0xf8] sm:$0xff]
      %v1277 = vld [vmem:[#allocation6 + $0x100] sm:$0xff]
      %v1278 = vld [vmem:[#allocation6 + $0x108] sm:$0xff]
      %v1279 = vld [vmem:[#allocation6 + $0x110] sm:$0xff]
      %v1280 = vld [vmem:[#allocation6 + $0x118] sm:$0xff]
      %v1281 = vld [vmem:[#allocation6 + $0x120] sm:$0xff]
      %v1282 = vld [vmem:[#allocation6 + $0x128] sm:$0xff]
      %v1283 = vld [vmem:[#allocation6 + $0x130] sm:$0xff]
      %v1284 = vld [vmem:[#allocation6 + $0x138] sm:$0xff]
      %v1285 = vld [vmem:[#allocation6 + $0x140] sm:$0xff]
      %v1286 = vld [vmem:[#allocation6 + $0x148] sm:$0xff]
      %v1287 = vld [vmem:[#allocation6 + $0x150] sm:$0xff]
      %v1288 = vld [vmem:[#allocation6 + $0x158] sm:$0xff]
      %v1289 = vld [vmem:[#allocation6 + $0x160] sm:$0xff]
      %v1290 = vld [vmem:[#allocation6 + $0x168] sm:$0xff]
      %v1291 = vld [vmem:[#allocation6 + $0x170] sm:$0xff]
      %v1292 = vld [vmem:[#allocation6 + $0x178] sm:$0xff]
      %v1293 = vld [vmem:[#allocation6 + $0x180] sm:$0xff]
      %v1294 = vld [vmem:[#allocation6 + $0x188] sm:$0xff]
      %v1295 = vld [vmem:[#allocation6 + $0x190] sm:$0xff]
      %v1296 = vld [vmem:[#allocation6 + $0x198] sm:$0xff]
      %v1297 = vld [vmem:[#allocation6 + $0x1a0] sm:$0xff]
      %v1298 = vld [vmem:[#allocation6 + $0x1a8] sm:$0xff]
      %v1299 = vld [vmem:[#allocation6 + $0x1b0] sm:$0xff]
      %v1300 = vld [vmem:[#allocation6 + $0x1b8] sm:$0xff]
      %v1301 = vld [vmem:[#allocation6 + $0x1c0] sm:$0xff]
      %v1302 = vld [vmem:[#allocation6 + $0x1c8] sm:$0xff]
      %v1303 = vld [vmem:[#allocation6 + $0x1d0] sm:$0xff]
      %v1304 = vld [vmem:[#allocation6 + $0x1d8] sm:$0xff]
      %v1305 = vld [vmem:[#allocation6 + $0x1e0] sm:$0xff]
      %v1306 = vld [vmem:[#allocation6 + $0x1e8] sm:$0xff]
      %v1307 = vld [vmem:[#allocation6 + $0x1f0] sm:$0xff]
      %v1308 = vld [vmem:[#allocation6 + $0x1f8] sm:$0xff]
      %v1309 = vld [vmem:[#allocation6 + $0x200] sm:$0xff]
      %v1310 = vld [vmem:[#allocation6 + $0x208] sm:$0xff]
      %v1311 = vld [vmem:[#allocation6 + $0x210] sm:$0xff]
      %v1312 = vld [vmem:[#allocation6 + $0x218] sm:$0xff]
      %v1313 = vld [vmem:[#allocation6 + $0x220] sm:$0xff]
      %v1314 = vld [vmem:[#allocation6 + $0x228] sm:$0xff]
      %v1315 = vld [vmem:[#allocation6 + $0x230] sm:$0xff]
      %v1316 = vld [vmem:[#allocation6 + $0x238] sm:$0xff]
      %v1317 = vpack.c.bf16 %v1254, %v1245
      %v1318 = vpack.c.bf16 %v1255, %v1246
      %v1319 = vpack.c.bf16 %v1256, %v1247
      %v1320 = vpack.c.bf16 %v1257, %v1248
      %v1321 = vpack.c.bf16 %v1258, %v1249
      %v1322 = vpack.c.bf16 %v1259, %v1250
      %v1323 = vpack.c.bf16 %v1260, %v1251
      %v1324 = vpack.c.bf16 %v1261, %v1252
      %v1325 = vpack.c.bf16 %v1262, %v1253
      %v1326 = vpack.c.bf16 %v1272, %v1263
      %v1327 = vpack.c.bf16 %v1273, %v1264
      %v1328 = vpack.c.bf16 %v1274, %v1265
      %v1329 = vpack.c.bf16 %v1275, %v1266
      %v1330 = vpack.c.bf16 %v1276, %v1267
      %v1331 = vpack.c.bf16 %v1277, %v1268
      %v1332 = vpack.c.bf16 %v1278, %v1269
      %v1333 = vpack.c.bf16 %v1279, %v1270
      %v1334 = vpack.c.bf16 %v1280, %v1271
      %v1335 = vpack.c.bf16 %v1290, %v1281
      %v1336 = vpack.c.bf16 %v1291, %v1282
      %v1337 = vpack.c.bf16 %v1292, %v1283
      %v1338 = vpack.c.bf16 %v1293, %v1284
      %v1339 = vpack.c.bf16 %v1294, %v1285
      %v1340 = vpack.c.bf16 %v1295, %v1286
      %v1341 = vpack.c.bf16 %v1296, %v1287
      %v1342 = vpack.c.bf16 %v1297, %v1288
      %v1343 = vpack.c.bf16 %v1298, %v1289
      %v1344 = vpack.c.bf16 %v1308, %v1299
      %v1345 = vpack.c.bf16 %v1309, %v1300
      %v1346 = vpack.c.bf16 %v1310, %v1301
      %v1347 = vpack.c.bf16 %v1311, %v1302
      %v1348 = vpack.c.bf16 %v1312, %v1303
      %v1349 = vpack.c.bf16 %v1313, %v1304
      %v1350 = vpack.c.bf16 %v1314, %v1305
      %v1351 = vpack.c.bf16 %v1315, %v1306
      %v1352 = vpack.c.bf16 %v1316, %v1307
      %v1353 = vld [vmem:[%s4] sm:$0xf]
      %v1354 = vld [vmem:[%s4 + $0x4] sm:$0xf]
      %v1355 = vld [vmem:[%s4 + $0x8] sm:$0xf]
      %v1356 = vld [vmem:[%s4 + $0xc] sm:$0xf]
      %v1357 = vld [vmem:[%s4 + $0x10] sm:$0xf]
      %v1358 = vld [vmem:[%s4 + $0x14] sm:$0xf]
      %v1359 = vld [vmem:[%s4 + $0x18] sm:$0xf]
      %v1360 = vld [vmem:[%s4 + $0x1c] sm:$0xf]
      %v1361 = vld [vmem:[%s4 + $0x20] sm:$0xf]
      %v1362 = vld [vmem:[%s4 + $0x24] sm:$0xf]
      %v1363 = vld [vmem:[%s4 + $0x28] sm:$0xf]
      %v1364 = vld [vmem:[%s4 + $0x2c] sm:$0xf]
      %v1365 = vld [vmem:[%s4 + $0x30] sm:$0xf]
      %v1366 = vld [vmem:[%s4 + $0x34] sm:$0xf]
      %v1367 = vld [vmem:[%s4 + $0x38] sm:$0xf]
      %v1368 = vld [vmem:[%s4 + $0x3c] sm:$0xf]
      %v1369 = vld [vmem:[%s4 + $0x40] sm:$0xf]
      %v1370 = vld [vmem:[%s4 + $0x44] sm:$0xf]
      %v1371 = vld [vmem:[%s4 + $0x48] sm:$0xf]
      %v1372 = vld [vmem:[%s4 + $0x4c] sm:$0xf]
      %v1373 = vld [vmem:[%s4 + $0x50] sm:$0xf]
      %v1374 = vld [vmem:[%s4 + $0x54] sm:$0xf]
      %v1375 = vld [vmem:[%s4 + $0x58] sm:$0xf]
      %v1376 = vld [vmem:[%s4 + $0x5c] sm:$0xf]
      %v1377 = vld [vmem:[%s4 + $0x60] sm:$0xf]
      %v1378 = vld [vmem:[%s4 + $0x64] sm:$0xf]
      %v1379 = vld [vmem:[%s4 + $0x68] sm:$0xf]
      %v1380 = vld [vmem:[%s4 + $0x6c] sm:$0xf]
      %v1381 = vld [vmem:[%s4 + $0x70] sm:$0xf]
      %v1382 = vld [vmem:[%s4 + $0x74] sm:$0xf]
      %v1383 = vld [vmem:[%s4 + $0x78] sm:$0xf]
      %v1384 = vld [vmem:[%s4 + $0x7c] sm:$0xf]
      %v1385 = vld [vmem:[%s4 + $0x80] sm:$0xf]
      %v1386 = vld [vmem:[%s4 + $0x84] sm:$0xf]
      %v1387 = vld [vmem:[%s4 + $0x88] sm:$0xf]
      %v1388 = vld [vmem:[%s4 + $0x8c] sm:$0xf]
      %v1389 = vld [vmem:[%s4 + $0x90] sm:$0xf]
      %v1390 = vld [vmem:[%s4 + $0x94] sm:$0xf]
      %v1391 = vld [vmem:[%s4 + $0x98] sm:$0xf]
      %v1392 = vld [vmem:[%s4 + $0x9c] sm:$0xf]
      %v1393 = vld [vmem:[%s4 + $0xa0] sm:$0xf]
      %v1394 = vld [vmem:[%s4 + $0xa4] sm:$0xf]
      %v1395 = vld [vmem:[%s4 + $0xa8] sm:$0xf]
      %v1396 = vld [vmem:[%s4 + $0xac] sm:$0xf]
      %v1397 = vld [vmem:[%s4 + $0xb0] sm:$0xf]
      %v1398 = vld [vmem:[%s4 + $0xb4] sm:$0xf]
      %v1399 = vld [vmem:[%s4 + $0xb8] sm:$0xf]
      %v1400 = vld [vmem:[%s4 + $0xbc] sm:$0xf]
      %v1401 = vld [vmem:[%s4 + $0xc0] sm:$0xf]
      %v1402 = vld [vmem:[%s4 + $0xc4] sm:$0xf]
      %v1403 = vld [vmem:[%s4 + $0xc8] sm:$0xf]
      %v1404 = vld [vmem:[%s4 + $0xcc] sm:$0xf]
      %v1405 = vld [vmem:[%s4 + $0xd0] sm:$0xf]
      %v1406 = vld [vmem:[%s4 + $0xd4] sm:$0xf]
      %v1407 = vld [vmem:[%s4 + $0xd8] sm:$0xf]
      %v1408 = vld [vmem:[%s4 + $0xdc] sm:$0xf]
      %v1409 = vld [vmem:[%s4 + $0xe0] sm:$0xf]
      %v1410 = vld [vmem:[%s4 + $0xe4] sm:$0xf]
      %v1411 = vld [vmem:[%s4 + $0xe8] sm:$0xf]
      %v1412 = vld [vmem:[%s4 + $0xec] sm:$0xf]
      %v1413 = vld [vmem:[%s4 + $0xf0] sm:$0xf]
      %v1414 = vld [vmem:[%s4 + $0xf4] sm:$0xf]
      %v1415 = vld [vmem:[%s4 + $0xf8] sm:$0xf]
      %v1416 = vld [vmem:[%s4 + $0xfc] sm:$0xf]
      %v1417 = vld [vmem:[%s4 + $0x100] sm:$0xf]
      %v1418 = vld [vmem:[%s4 + $0x104] sm:$0xf]
      %v1419 = vld [vmem:[%s4 + $0x108] sm:$0xf]
      %v1420 = vld [vmem:[%s4 + $0x10c] sm:$0xf]
      %v1421 = vld [vmem:[%s4 + $0x110] sm:$0xf]
      %v1422 = vld [vmem:[%s4 + $0x114] sm:$0xf]
      %v1423 = vld [vmem:[%s4 + $0x118] sm:$0xf]
      %v1424 = vld [vmem:[%s4 + $0x11c] sm:$0xf]
      %v1425 = vld [vmem:[%s4 + $0x120] sm:$0xf]
      %v1426 = vld [vmem:[%s4 + $0x124] sm:$0xf]
      %v1427 = vld [vmem:[%s4 + $0x128] sm:$0xf]
      %v1428 = vld [vmem:[%s4 + $0x12c] sm:$0xf]
      %v1429 = vld [vmem:[%s4 + $0x130] sm:$0xf]
      %v1430 = vld [vmem:[%s4 + $0x134] sm:$0xf]
      %v1431 = vld [vmem:[%s4 + $0x138] sm:$0xf]
      %v1432 = vld [vmem:[%s4 + $0x13c] sm:$0xf]
      %v1433 = vld [vmem:[%s4 + $0x140] sm:$0xf]
      %v1434 = vld [vmem:[%s4 + $0x144] sm:$0xf]
      %v1435 = vld [vmem:[%s4 + $0x148] sm:$0xf]
      %v1436 = vld [vmem:[%s4 + $0x14c] sm:$0xf]
      %v1437 = vld [vmem:[%s4 + $0x150] sm:$0xf]
      %v1438 = vld [vmem:[%s4 + $0x154] sm:$0xf]
      %v1439 = vld [vmem:[%s4 + $0x158] sm:$0xf]
      %v1440 = vld [vmem:[%s4 + $0x15c] sm:$0xf]
      %v1441 = vld [vmem:[%s4 + $0x160] sm:$0xf]
      %v1442 = vld [vmem:[%s4 + $0x164] sm:$0xf]
      %v1443 = vld [vmem:[%s4 + $0x168] sm:$0xf]
      %v1444 = vld [vmem:[%s4 + $0x16c] sm:$0xf]
      %v1445 = vld [vmem:[%s4 + $0x170] sm:$0xf]
      %v1446 = vld [vmem:[%s4 + $0x174] sm:$0xf]
      %v1447 = vld [vmem:[%s4 + $0x178] sm:$0xf]
      %v1448 = vld [vmem:[%s4 + $0x17c] sm:$0xf]
      %v1449 = vld [vmem:[%s4 + $0x180] sm:$0xf]
      %v1450 = vld [vmem:[%s4 + $0x184] sm:$0xf]
      %v1451 = vld [vmem:[%s4 + $0x188] sm:$0xf]
      %v1452 = vld [vmem:[%s4 + $0x18c] sm:$0xf]
      %v1453 = vld [vmem:[%s4 + $0x190] sm:$0xf]
      %v1454 = vld [vmem:[%s4 + $0x194] sm:$0xf]
      %v1455 = vld [vmem:[%s4 + $0x198] sm:$0xf]
      %v1456 = vld [vmem:[%s4 + $0x19c] sm:$0xf]
      %v1457 = vld [vmem:[%s4 + $0x1a0] sm:$0xf]
      %v1458 = vld [vmem:[%s4 + $0x1a4] sm:$0xf]
      %v1459 = vld [vmem:[%s4 + $0x1a8] sm:$0xf]
      %v1460 = vld [vmem:[%s4 + $0x1ac] sm:$0xf]
      %v1461 = vld [vmem:[%s4 + $0x1b0] sm:$0xf]
      %v1462 = vld [vmem:[%s4 + $0x1b4] sm:$0xf]
      %v1463 = vld [vmem:[%s4 + $0x1b8] sm:$0xf]
      %v1464 = vld [vmem:[%s4 + $0x1bc] sm:$0xf]
      %v1465 = vld [vmem:[%s4 + $0x1c0] sm:$0xf]
      %v1466 = vld [vmem:[%s4 + $0x1c4] sm:$0xf]
      %v1467 = vld [vmem:[%s4 + $0x1c8] sm:$0xf]
      %v1468 = vld [vmem:[%s4 + $0x1cc] sm:$0xf]
      %v1469 = vld [vmem:[%s4 + $0x1d0] sm:$0xf]
      %v1470 = vld [vmem:[%s4 + $0x1d4] sm:$0xf]
      %v1471 = vld [vmem:[%s4 + $0x1d8] sm:$0xf]
      %v1472 = vld [vmem:[%s4 + $0x1dc] sm:$0xf]
      %v1473 = vld [vmem:[%s4 + $0x1e0] sm:$0xf]
      %v1474 = vld [vmem:[%s4 + $0x1e4] sm:$0xf]
      %v1475 = vld [vmem:[%s4 + $0x1e8] sm:$0xf]
      %v1476 = vld [vmem:[%s4 + $0x1ec] sm:$0xf]
      %v1477 = vld [vmem:[%s4 + $0x1f0] sm:$0xf]
      %v1478 = vld [vmem:[%s4 + $0x1f4] sm:$0xf]
      %v1479 = vld [vmem:[%s4 + $0x1f8] sm:$0xf]
      %v1480 = vld [vmem:[%s4 + $0x1fc] sm:$0xf]
      %v1481 = vld [vmem:[%s4 + $0x200] sm:$0xf]
      %v1482 = vld [vmem:[%s4 + $0x204] sm:$0xf]
      %v1483 = vld [vmem:[%s4 + $0x208] sm:$0xf]
      %v1484 = vld [vmem:[%s4 + $0x20c] sm:$0xf]
      %v1485 = vld [vmem:[%s4 + $0x210] sm:$0xf]
      %v1486 = vld [vmem:[%s4 + $0x214] sm:$0xf]
      %v1487 = vld [vmem:[%s4 + $0x218] sm:$0xf]
      %v1488 = vld [vmem:[%s4 + $0x21c] sm:$0xf]
      %v1489 = vld [vmem:[%s4 + $0x220] sm:$0xf]
      %v1490 = vld [vmem:[%s4 + $0x224] sm:$0xf]
      %v1491 = vld [vmem:[%s4 + $0x228] sm:$0xf]
      %v1492 = vld [vmem:[%s4 + $0x22c] sm:$0xf]
      %v1493 = vld [vmem:[%s4 + $0x230] sm:$0xf]
      %v1494 = vld [vmem:[%s4 + $0x234] sm:$0xf]
      %v1495 = vld [vmem:[%s4 + $0x238] sm:$0xf]
      %v1496 = vld [vmem:[%s4 + $0x23c] sm:$0xf]
      %v1641 = vunpack.c.l.b16 %v1353
      %v1642 = vunpack.c.l.b16 %v1354
      %v1643 = vunpack.c.l.b16 %v1355
      %v1644 = vunpack.c.l.b16 %v1356
      %v1645 = vunpack.c.l.b16 %v1357
      %v1646 = vunpack.c.l.b16 %v1358
      %v1647 = vunpack.c.l.b16 %v1359
      %v1648 = vunpack.c.l.b16 %v1360
      %v1649 = vunpack.c.l.b16 %v1361
      %v1650 = vunpack.c.l.b16 %v1362
      %v1651 = vunpack.c.l.b16 %v1363
      %v1652 = vunpack.c.l.b16 %v1364
      %v1653 = vunpack.c.l.b16 %v1365
      %v1654 = vunpack.c.l.b16 %v1366
      %v1655 = vunpack.c.l.b16 %v1367
      %v1656 = vunpack.c.l.b16 %v1368
      %v1657 = vunpack.c.l.b16 %v1369
      %v1658 = vunpack.c.l.b16 %v1370
      %v1659 = vunpack.c.l.b16 %v1371
      %v1660 = vunpack.c.l.b16 %v1372
      %v1661 = vunpack.c.l.b16 %v1373
      %v1662 = vunpack.c.l.b16 %v1374
      %v1663 = vunpack.c.l.b16 %v1375
      %v1664 = vunpack.c.l.b16 %v1376
      %v1665 = vunpack.c.l.b16 %v1377
      %v1666 = vunpack.c.l.b16 %v1378
      %v1667 = vunpack.c.l.b16 %v1379
      %v1668 = vunpack.c.l.b16 %v1380
      %v1669 = vunpack.c.l.b16 %v1381
      %v1670 = vunpack.c.l.b16 %v1382
      %v1671 = vunpack.c.l.b16 %v1383
      %v1672 = vunpack.c.l.b16 %v1384
      %v1673 = vunpack.c.l.b16 %v1385
      %v1674 = vunpack.c.l.b16 %v1386
      %v1675 = vunpack.c.l.b16 %v1387
      %v1676 = vunpack.c.l.b16 %v1388
      %v1677 = vunpack.c.l.b16 %v1389
      %v1678 = vunpack.c.l.b16 %v1390
      %v1679 = vunpack.c.l.b16 %v1391
      %v1680 = vunpack.c.l.b16 %v1392
      %v1681 = vunpack.c.l.b16 %v1393
      %v1682 = vunpack.c.l.b16 %v1394
      %v1683 = vunpack.c.l.b16 %v1395
      %v1684 = vunpack.c.l.b16 %v1396
      %v1685 = vunpack.c.l.b16 %v1397
      %v1686 = vunpack.c.l.b16 %v1398
      %v1687 = vunpack.c.l.b16 %v1399
      %v1688 = vunpack.c.l.b16 %v1400
      %v1689 = vunpack.c.l.b16 %v1401
      %v1690 = vunpack.c.l.b16 %v1402
      %v1691 = vunpack.c.l.b16 %v1403
      %v1692 = vunpack.c.l.b16 %v1404
      %v1693 = vunpack.c.l.b16 %v1405
      %v1694 = vunpack.c.l.b16 %v1406
      %v1695 = vunpack.c.l.b16 %v1407
      %v1696 = vunpack.c.l.b16 %v1408
      %v1697 = vunpack.c.l.b16 %v1409
      %v1698 = vunpack.c.l.b16 %v1410
      %v1699 = vunpack.c.l.b16 %v1411
      %v1700 = vunpack.c.l.b16 %v1412
      %v1701 = vunpack.c.l.b16 %v1413
      %v1702 = vunpack.c.l.b16 %v1414
      %v1703 = vunpack.c.l.b16 %v1415
      %v1704 = vunpack.c.l.b16 %v1416
      %v1705 = vunpack.c.l.b16 %v1417
      %v1706 = vunpack.c.l.b16 %v1418
      %v1707 = vunpack.c.l.b16 %v1419
      %v1708 = vunpack.c.l.b16 %v1420
      %v1709 = vunpack.c.l.b16 %v1421
      %v1710 = vunpack.c.l.b16 %v1422
      %v1711 = vunpack.c.l.b16 %v1423
      %v1712 = vunpack.c.l.b16 %v1424
      %v1713 = vunpack.c.l.b16 %v1425
      %v1714 = vunpack.c.l.b16 %v1426
      %v1715 = vunpack.c.l.b16 %v1427
      %v1716 = vunpack.c.l.b16 %v1428
      %v1717 = vunpack.c.l.b16 %v1429
      %v1718 = vunpack.c.l.b16 %v1430
      %v1719 = vunpack.c.l.b16 %v1431
      %v1720 = vunpack.c.l.b16 %v1432
      %v1721 = vunpack.c.l.b16 %v1433
      %v1722 = vunpack.c.l.b16 %v1434
      %v1723 = vunpack.c.l.b16 %v1435
      %v1724 = vunpack.c.l.b16 %v1436
      %v1725 = vunpack.c.l.b16 %v1437
      %v1726 = vunpack.c.l.b16 %v1438
      %v1727 = vunpack.c.l.b16 %v1439
      %v1728 = vunpack.c.l.b16 %v1440
      %v1729 = vunpack.c.l.b16 %v1441
      %v1730 = vunpack.c.l.b16 %v1442
      %v1731 = vunpack.c.l.b16 %v1443
      %v1732 = vunpack.c.l.b16 %v1444
      %v1733 = vunpack.c.l.b16 %v1445
      %v1734 = vunpack.c.l.b16 %v1446
      %v1735 = vunpack.c.l.b16 %v1447
      %v1736 = vunpack.c.l.b16 %v1448
      %v1737 = vunpack.c.l.b16 %v1449
      %v1738 = vunpack.c.l.b16 %v1450
      %v1739 = vunpack.c.l.b16 %v1451
      %v1740 = vunpack.c.l.b16 %v1452
      %v1741 = vunpack.c.l.b16 %v1453
      %v1742 = vunpack.c.l.b16 %v1454
      %v1743 = vunpack.c.l.b16 %v1455
      %v1744 = vunpack.c.l.b16 %v1456
      %v1745 = vunpack.c.l.b16 %v1457
      %v1746 = vunpack.c.l.b16 %v1458
      %v1747 = vunpack.c.l.b16 %v1459
      %v1748 = vunpack.c.l.b16 %v1460
      %v1749 = vunpack.c.l.b16 %v1461
      %v1750 = vunpack.c.l.b16 %v1462
      %v1751 = vunpack.c.l.b16 %v1463
      %v1752 = vunpack.c.l.b16 %v1464
      %v1753 = vunpack.c.l.b16 %v1465
      %v1754 = vunpack.c.l.b16 %v1466
      %v1755 = vunpack.c.l.b16 %v1467
      %v1756 = vunpack.c.l.b16 %v1468
      %v1757 = vunpack.c.l.b16 %v1469
      %v1758 = vunpack.c.l.b16 %v1470
      %v1759 = vunpack.c.l.b16 %v1471
      %v1760 = vunpack.c.l.b16 %v1472
      %v1761 = vunpack.c.l.b16 %v1473
      %v1762 = vunpack.c.l.b16 %v1474
      %v1763 = vunpack.c.l.b16 %v1475
      %v1764 = vunpack.c.l.b16 %v1476
      %v1765 = vunpack.c.l.b16 %v1477
      %v1766 = vunpack.c.l.b16 %v1478
      %v1767 = vunpack.c.l.b16 %v1479
      %v1768 = vunpack.c.l.b16 %v1480
      %v1769 = vunpack.c.l.b16 %v1481
      %v1770 = vunpack.c.l.b16 %v1482
      %v1771 = vunpack.c.l.b16 %v1483
      %v1772 = vunpack.c.l.b16 %v1484
      %v1773 = vunpack.c.l.b16 %v1485
      %v1774 = vunpack.c.l.b16 %v1486
      %v1775 = vunpack.c.l.b16 %v1487
      %v1776 = vunpack.c.l.b16 %v1488
      %v1777 = vunpack.c.l.b16 %v1489
      %v1778 = vunpack.c.l.b16 %v1490
      %v1779 = vunpack.c.l.b16 %v1491
      %v1780 = vunpack.c.l.b16 %v1492
      %v1781 = vunpack.c.l.b16 %v1493
      %v1782 = vunpack.c.l.b16 %v1494
      %v1783 = vunpack.c.l.b16 %v1495
      %v1784 = vunpack.c.l.b16 %v1496
      %v1785 = vpack.c.b16 %v1642, %v1641
      %v1786 = vpack.c.b16 %v1644, %v1643
      %v1787 = vpack.c.b16 %v1646, %v1645
      %v1788 = vpack.c.b16 %v1648, %v1647
      %v1789 = vpack.c.b16 %v1650, %v1649
      %v1790 = vpack.c.b16 %v1652, %v1651
      %v1791 = vpack.c.b16 %v1654, %v1653
      %v1792 = vpack.c.b16 %v1656, %v1655
      %v1793 = vpack.c.b16 %v1658, %v1657
      %v1794 = vpack.c.b16 %v1660, %v1659
      %v1795 = vpack.c.b16 %v1662, %v1661
      %v1796 = vpack.c.b16 %v1664, %v1663
      %v1797 = vpack.c.b16 %v1666, %v1665
      %v1798 = vpack.c.b16 %v1668, %v1667
      %v1799 = vpack.c.b16 %v1670, %v1669
      %v1800 = vpack.c.b16 %v1672, %v1671
      %v1801 = vpack.c.b16 %v1674, %v1673
      %v1802 = vpack.c.b16 %v1676, %v1675
      %v1803 = vpack.c.b16 %v1678, %v1677
      %v1804 = vpack.c.b16 %v1680, %v1679
      %v1805 = vpack.c.b16 %v1682, %v1681
      %v1806 = vpack.c.b16 %v1684, %v1683
      %v1807 = vpack.c.b16 %v1686, %v1685
      %v1808 = vpack.c.b16 %v1688, %v1687
      %v1809 = vpack.c.b16 %v1690, %v1689
      %v1810 = vpack.c.b16 %v1692, %v1691
      %v1811 = vpack.c.b16 %v1694, %v1693
      %v1812 = vpack.c.b16 %v1696, %v1695
      %v1813 = vpack.c.b16 %v1698, %v1697
      %v1814 = vpack.c.b16 %v1700, %v1699
      %v1815 = vpack.c.b16 %v1702, %v1701
      %v1816 = vpack.c.b16 %v1704, %v1703
      %v1817 = vpack.c.b16 %v1706, %v1705
      %v1818 = vpack.c.b16 %v1708, %v1707
      %v1819 = vpack.c.b16 %v1710, %v1709
      %v1820 = vpack.c.b16 %v1712, %v1711
      %v1821 = vpack.c.b16 %v1714, %v1713
      %v1822 = vpack.c.b16 %v1716, %v1715
      %v1823 = vpack.c.b16 %v1718, %v1717
      %v1824 = vpack.c.b16 %v1720, %v1719
      %v1825 = vpack.c.b16 %v1722, %v1721
      %v1826 = vpack.c.b16 %v1724, %v1723
      %v1827 = vpack.c.b16 %v1726, %v1725
      %v1828 = vpack.c.b16 %v1728, %v1727
      %v1829 = vpack.c.b16 %v1730, %v1729
      %v1830 = vpack.c.b16 %v1732, %v1731
      %v1831 = vpack.c.b16 %v1734, %v1733
      %v1832 = vpack.c.b16 %v1736, %v1735
      %v1833 = vpack.c.b16 %v1738, %v1737
      %v1834 = vpack.c.b16 %v1740, %v1739
      %v1835 = vpack.c.b16 %v1742, %v1741
      %v1836 = vpack.c.b16 %v1744, %v1743
      %v1837 = vpack.c.b16 %v1746, %v1745
      %v1838 = vpack.c.b16 %v1748, %v1747
      %v1839 = vpack.c.b16 %v1750, %v1749
      %v1840 = vpack.c.b16 %v1752, %v1751
      %v1841 = vpack.c.b16 %v1754, %v1753
      %v1842 = vpack.c.b16 %v1756, %v1755
      %v1843 = vpack.c.b16 %v1758, %v1757
      %v1844 = vpack.c.b16 %v1760, %v1759
      %v1845 = vpack.c.b16 %v1762, %v1761
      %v1846 = vpack.c.b16 %v1764, %v1763
      %v1847 = vpack.c.b16 %v1766, %v1765
      %v1848 = vpack.c.b16 %v1768, %v1767
      %v1849 = vpack.c.b16 %v1770, %v1769
      %v1850 = vpack.c.b16 %v1772, %v1771
      %v1851 = vpack.c.b16 %v1774, %v1773
      %v1852 = vpack.c.b16 %v1776, %v1775
      %v1853 = vpack.c.b16 %v1778, %v1777
      %v1854 = vpack.c.b16 %v1780, %v1779
      %v1855 = vpack.c.b16 %v1782, %v1781
      %v1856 = vpack.c.b16 %v1784, %v1783
      %1929 = vmatprep.subr.bf16.mxu0 0
      %1930 = vmatpush1.bf16.msra.mxu0 %v1785
      %1931 = vmatprep.subr.bf16.mxu0 0
      %1932 = vmatpush1.bf16.msra.mxu0 %v1786
      %1933 = vmatprep.subr.bf16.mxu0 0
      %1934 = vmatpush1.bf16.msra.mxu0 %v1787
      %1935 = vmatprep.subr.bf16.mxu0 0
      %1936 = vmatpush1.bf16.msra.mxu0 %v1788
      %1937 = vmatprep.subr.bf16.mxu0 0
      %1938 = vmatpush1.bf16.msra.mxu0 %v1789
      %1939 = vmatprep.subr.bf16.mxu0 0
      %1940 = vmatpush1.bf16.msra.mxu0 %v1790
      %1941 = vmatprep.subr.bf16.mxu0 0
      %1942 = vmatpush1.bf16.msra.mxu0 %v1791
      %1943 = vmatprep.subr.bf16.mxu0 0
      %1944 = vmatpush1.bf16.msra.mxu0 %v1792
      %1945 = vmatprep.subr.bf16.mxu0 0
      %1946 = vmatpush1.bf16.msra.mxu0 %v1793
      %1947 = vmatprep.subr.bf16.mxu0 0
      %1948 = vmatpush1.bf16.msra.mxu0 %v1794
      %1949 = vmatprep.subr.bf16.mxu0 0
      %1950 = vmatpush1.bf16.msra.mxu0 %v1795
      %1951 = vmatprep.subr.bf16.mxu0 0
      %1952 = vmatpush1.bf16.msra.mxu0 %v1796
      %1953 = vmatprep.subr.bf16.mxu0 0
      %1954 = vmatpush1.bf16.msra.mxu0 %v1797
      %1955 = vmatprep.subr.bf16.mxu0 0
      %1956 = vmatpush1.bf16.msra.mxu0 %v1798
      %1957 = vmatprep.subr.bf16.mxu0 0
      %1958 = vmatpush1.bf16.msra.mxu0 %v1799
      %1959 = vmatprep.subr.bf16.mxu0 0
      %1960 = vmatpush1.bf16.msra.mxu0 %v1800
      %1961 = vmatprep.mubr.bf16.mxu0 %v1318
      %1962 = vmatmul.mubr.bf16.gmra.mrb[0].mxu0 %v1317
      %v1963 = vpop.f32.mrb[0].mxu0
      %v1964 = vadd.f32 0.0, %v1963
      %v1965 = vpop.f32.mrb[0].mxu0
      %v1966 = vpop.f32.mrb[0].mxu0
      %v1967 = vadd.f32 0.0, %v1966
      %v1968 = vpop.f32.mrb[0].mxu0
      %1969 = vmatprep.mubr.bf16.mxu0 %v1327
      %1970 = vmatmul.mubr.bf16.gmra.mrb[0].mxu0 %v1326
      %v1971 = vpop.f32.mrb[0].mxu0
      %v1972 = vadd.f32 0.0, %v1971
      %v1973 = vpop.f32.mrb[0].mxu0
      %v1974 = vpop.f32.mrb[0].mxu0
      %v1975 = vadd.f32 0.0, %v1974
      %v1976 = vpop.f32.mrb[0].mxu0
      %1977 = vmatprep.mubr.bf16.mxu0 %v1336
      %1978 = vmatmul.mubr.bf16.gmra.mrb[0].mxu0 %v1335
      %v1979 = vpop.f32.mrb[0].mxu0
      %v1980 = vadd.f32 0.0, %v1979
      %v1981 = vpop.f32.mrb[0].mxu0
      %v1982 = vpop.f32.mrb[0].mxu0
      %v1983 = vadd.f32 0.0, %v1982
      %v1984 = vpop.f32.mrb[0].mxu0
      %1985 = vmatprep.mubr.bf16.mxu0 %v1345
      %1986 = vmatmul.mubr.bf16.gmra.mrb[0].mxu0 %v1344
      %v1987 = vpop.f32.mrb[0].mxu0
      %v1988 = vadd.f32 0.0, %v1987
      %v1989 = vpop.f32.mrb[0].mxu0
      %v1990 = vpop.f32.mrb[0].mxu0
      %v1991 = vadd.f32 0.0, %v1990
      %v1992 = vpop.f32.mrb[0].mxu0
      %1993 = vdwg.mxu0
      %1994 = vmatprep.subr.bf16.mxu0 0
      %1995 = vmatpush1.bf16.msra.mxu0 %v1801
      %1996 = vmatprep.subr.bf16.mxu0 0
      %1997 = vmatpush1.bf16.msra.mxu0 %v1802
      %1998 = vmatprep.subr.bf16.mxu0 0
      %1999 = vmatpush1.bf16.msra.mxu0 %v1803
      %2000 = vmatprep.subr.bf16.mxu0 0
      %2001 = vmatpush1.bf16.msra.mxu0 %v1804
      %2002 = vmatprep.subr.bf16.mxu0 0
      %2003 = vmatpush1.bf16.msra.mxu0 %v1805
      %2004 = vmatprep.subr.bf16.mxu0 0
      %2005 = vmatpush1.bf16.msra.mxu0 %v1806
      %2006 = vmatprep.subr.bf16.mxu0 0
      %2007 = vmatpush1.bf16.msra.mxu0 %v1807
      %2008 = vmatprep.subr.bf16.mxu0 0
      %2009 = vmatpush1.bf16.msra.mxu0 %v1808
      %2010 = vmatprep.subr.bf16.mxu0 0
      %2011 = vmatpush1.bf16.msra.mxu0 %v1809
      %2012 = vmatprep.subr.bf16.mxu0 0
      %2013 = vmatpush1.bf16.msra.mxu0 %v1810
      %2014 = vmatprep.subr.bf16.mxu0 0
      %2015 = vmatpush1.bf16.msra.mxu0 %v1811
      %2016 = vmatprep.subr.bf16.mxu0 0
      %2017 = vmatpush1.bf16.msra.mxu0 %v1812
      %2018 = vmatprep.subr.bf16.mxu0 0
      %2019 = vmatpush1.bf16.msra.mxu0 %v1813
      %2020 = vmatprep.subr.bf16.mxu0 0
      %2021 = vmatpush1.bf16.msra.mxu0 %v1814
      %2022 = vmatprep.subr.bf16.mxu0 0
      %2023 = vmatpush1.bf16.msra.mxu0 %v1815
      %2024 = vmatprep.subr.bf16.mxu0 0
      %2025 = vmatpush1.bf16.msra.mxu0 %v1816
      %2026 = vmatprep.mubr.bf16.mxu0 %v1320
      %2027 = vmatmul.mubr.bf16.gmra.mrb[0].mxu0 %v1319
      %v2028 = vpop.f32.mrb[0].mxu0
      %v2029 = vadd.f32 %v1964, %v2028
      %v2030 = vpop.f32.mrb[0].mxu0
      %v2031 = vpop.f32.mrb[0].mxu0
      %v2032 = vadd.f32 %v1967, %v2031
      %v2033 = vpop.f32.mrb[0].mxu0
      %2034 = vmatprep.mubr.bf16.mxu0 %v1329
      %2035 = vmatmul.mubr.bf16.gmra.mrb[0].mxu0 %v1328
      %v2036 = vpop.f32.mrb[0].mxu0
      %v2037 = vadd.f32 %v1972, %v2036
      %v2038 = vpop.f32.mrb[0].mxu0
      %v2039 = vpop.f32.mrb[0].mxu0
      %v2040 = vadd.f32 %v1975, %v2039
      %v2041 = vpop.f32.mrb[0].mxu0
      %2042 = vmatprep.mubr.bf16.mxu0 %v1338
      %2043 = vmatmul.mubr.bf16.gmra.mrb[0].mxu0 %v1337
      %v2044 = vpop.f32.mrb[0].mxu0
      %v2045 = vadd.f32 %v1980, %v2044
      %v2046 = vpop.f32.mrb[0].mxu0
      %v2047 = vpop.f32.mrb[0].mxu0
      %v2048 = vadd.f32 %v1983, %v2047
      %v2049 = vpop.f32.mrb[0].mxu0
      %2050 = vmatprep.mubr.bf16.mxu0 %v1347
      %2051 = vmatmul.mubr.bf16.gmra.mrb[0].mxu0 %v1346
      %v2052 = vpop.f32.mrb[0].mxu0
      %v2053 = vadd.f32 %v1988, %v2052
      %v2054 = vpop.f32.mrb[0].mxu0
      %v2055 = vpop.f32.mrb[0].mxu0
      %v2056 = vadd.f32 %v1991, %v2055
      %v2057 = vpop.f32.mrb[0].mxu0
      %2058 = vdwg.mxu0
      %2059 = vmatprep.subr.bf16.mxu0 0
      %2060 = vmatpush1.bf16.msra.mxu0 %v1817
      %2061 = vmatprep.subr.bf16.mxu0 0
      %2062 = vmatpush1.bf16.msra.mxu0 %v1818
      %2063 = vmatprep.subr.bf16.mxu0 0
      %2064 = vmatpush1.bf16.msra.mxu0 %v1819
      %2065 = vmatprep.subr.bf16.mxu0 0
      %2066 = vmatpush1.bf16.msra.mxu0 %v1820
      %2067 = vmatprep.subr.bf16.mxu0 0
      %2068 = vmatpush1.bf16.msra.mxu0 %v1821
      %2069 = vmatprep.subr.bf16.mxu0 0
      %2070 = vmatpush1.bf16.msra.mxu0 %v1822
      %2071 = vmatprep.subr.bf16.mxu0 0
      %2072 = vmatpush1.bf16.msra.mxu0 %v1823
      %2073 = vmatprep.subr.bf16.mxu0 0
      %2074 = vmatpush1.bf16.msra.mxu0 %v1824
      %2075 = vmatprep.subr.bf16.mxu0 0
      %2076 = vmatpush1.bf16.msra.mxu0 %v1825
      %2077 = vmatprep.subr.bf16.mxu0 0
      %2078 = vmatpush1.bf16.msra.mxu0 %v1826
      %2079 = vmatprep.subr.bf16.mxu0 0
      %2080 = vmatpush1.bf16.msra.mxu0 %v1827
      %2081 = vmatprep.subr.bf16.mxu0 0
      %2082 = vmatpush1.bf16.msra.mxu0 %v1828
      %2083 = vmatprep.subr.bf16.mxu0 0
      %2084 = vmatpush1.bf16.msra.mxu0 %v1829
      %2085 = vmatprep.subr.bf16.mxu0 0
      %2086 = vmatpush1.bf16.msra.mxu0 %v1830
      %2087 = vmatprep.subr.bf16.mxu0 0
      %2088 = vmatpush1.bf16.msra.mxu0 %v1831
      %2089 = vmatprep.subr.bf16.mxu0 0
      %2090 = vmatpush1.bf16.msra.mxu0 %v1832
      %2091 = vmatprep.mubr.bf16.mxu0 %v1322
      %2092 = vmatmul.mubr.bf16.gmra.mrb[0].mxu0 %v1321
      %v2093 = vpop.f32.mrb[0].mxu0
      %v2094 = vadd.f32 %v2029, %v2093
      %v2095 = vpop.f32.mrb[0].mxu0
      %v2096 = vpop.f32.mrb[0].mxu0
      %v2097 = vadd.f32 %v2032, %v2096
      %v2098 = vpop.f32.mrb[0].mxu0
      %2099 = vmatprep.mubr.bf16.mxu0 %v1331
      %2100 = vmatmul.mubr.bf16.gmra.mrb[0].mxu0 %v1330
      %v2101 = vpop.f32.mrb[0].mxu0
      %v2102 = vadd.f32 %v2037, %v2101
      %v2103 = vpop.f32.mrb[0].mxu0
      %v2104 = vpop.f32.mrb[0].mxu0
      %v2105 = vadd.f32 %v2040, %v2104
      %v2106 = vpop.f32.mrb[0].mxu0
      %2107 = vmatprep.mubr.bf16.mxu0 %v1340
      %2108 = vmatmul.mubr.bf16.gmra.mrb[0].mxu0 %v1339
      %v2109 = vpop.f32.mrb[0].mxu0
      %v2110 = vadd.f32 %v2045, %v2109
      %v2111 = vpop.f32.mrb[0].mxu0
      %v2112 = vpop.f32.mrb[0].mxu0
      %v2113 = vadd.f32 %v2048, %v2112
      %v2114 = vpop.f32.mrb[0].mxu0
      %2115 = vmatprep.mubr.bf16.mxu0 %v1349
      %2116 = vmatmul.mubr.bf16.gmra.mrb[0].mxu0 %v1348
      %v2117 = vpop.f32.mrb[0].mxu0
      %v2118 = vadd.f32 %v2053, %v2117
      %v2119 = vpop.f32.mrb[0].mxu0
      %v2120 = vpop.f32.mrb[0].mxu0
      %v2121 = vadd.f32 %v2056, %v2120
      %v2122 = vpop.f32.mrb[0].mxu0
      %2123 = vdwg.mxu0
      %2124 = vmatprep.subr.bf16.mxu0 0
      %2125 = vmatpush1.bf16.msra.mxu0 %v1833
      %2126 = vmatprep.subr.bf16.mxu0 0
      %2127 = vmatpush1.bf16.msra.mxu0 %v1834
      %2128 = vmatprep.subr.bf16.mxu0 0
      %2129 = vmatpush1.bf16.msra.mxu0 %v1835
      %2130 = vmatprep.subr.bf16.mxu0 0
      %2131 = vmatpush1.bf16.msra.mxu0 %v1836
      %2132 = vmatprep.subr.bf16.mxu0 0
      %2133 = vmatpush1.bf16.msra.mxu0 %v1837
      %2134 = vmatprep.subr.bf16.mxu0 0
      %2135 = vmatpush1.bf16.msra.mxu0 %v1838
      %2136 = vmatprep.subr.bf16.mxu0 0
      %2137 = vmatpush1.bf16.msra.mxu0 %v1839
      %2138 = vmatprep.subr.bf16.mxu0 0
      %2139 = vmatpush1.bf16.msra.mxu0 %v1840
      %2140 = vmatprep.subr.bf16.mxu0 0
      %2141 = vmatpush1.bf16.msra.mxu0 %v1841
      %2142 = vmatprep.subr.bf16.mxu0 0
      %2143 = vmatpush1.bf16.msra.mxu0 %v1842
      %2144 = vmatprep.subr.bf16.mxu0 0
      %2145 = vmatpush1.bf16.msra.mxu0 %v1843
      %2146 = vmatprep.subr.bf16.mxu0 0
      %2147 = vmatpush1.bf16.msra.mxu0 %v1844
      %2148 = vmatprep.subr.bf16.mxu0 0
      %2149 = vmatpush1.bf16.msra.mxu0 %v1845
      %2150 = vmatprep.subr.bf16.mxu0 0
      %2151 = vmatpush1.bf16.msra.mxu0 %v1846
      %2152 = vmatprep.subr.bf16.mxu0 0
      %2153 = vmatpush1.bf16.msra.mxu0 %v1847
      %2154 = vmatprep.subr.bf16.mxu0 0
      %2155 = vmatpush1.bf16.msra.mxu0 %v1848
      %2156 = vmatprep.mubr.bf16.mxu0 %v1324
      %2157 = vmatmul.mubr.bf16.gmra.mrb[0].mxu0 %v1323
      %v2158 = vpop.f32.mrb[0].mxu0
      %v2159 = vadd.f32 %v2094, %v2158
      %v2160 = vpop.f32.mrb[0].mxu0
      %v2161 = vpop.f32.mrb[0].mxu0
      %v2162 = vadd.f32 %v2097, %v2161
      %v2163 = vpop.f32.mrb[0].mxu0
      %2164 = vmatprep.mubr.bf16.mxu0 %v1333
      %2165 = vmatmul.mubr.bf16.gmra.mrb[0].mxu0 %v1332
      %v2166 = vpop.f32.mrb[0].mxu0
      %v2167 = vadd.f32 %v2102, %v2166
      %v2168 = vpop.f32.mrb[0].mxu0
      %v2169 = vpop.f32.mrb[0].mxu0
      %v2170 = vadd.f32 %v2105, %v2169
      %v2171 = vpop.f32.mrb[0].mxu0
      %2172 = vmatprep.mubr.bf16.mxu0 %v1342
      %2173 = vmatmul.mubr.bf16.gmra.mrb[0].mxu0 %v1341
      %v2174 = vpop.f32.mrb[0].mxu0
      %v2175 = vadd.f32 %v2110, %v2174
      %v2176 = vpop.f32.mrb[0].mxu0
      %v2177 = vpop.f32.mrb[0].mxu0
      %v2178 = vadd.f32 %v2113, %v2177
      %v2179 = vpop.f32.mrb[0].mxu0
      %2180 = vmatprep.mubr.bf16.mxu0 %v1351
      %2181 = vmatmul.mubr.bf16.gmra.mrb[0].mxu0 %v1350
      %v2182 = vpop.f32.mrb[0].mxu0
      %v2183 = vadd.f32 %v2118, %v2182
      %v2184 = vpop.f32.mrb[0].mxu0
      %v2185 = vpop.f32.mrb[0].mxu0
      %v2186 = vadd.f32 %v2121, %v2185
      %v2187 = vpop.f32.mrb[0].mxu0
      %2188 = vdwg.mxu0
      %2189 = vmatprep.subr.bf16.mxu0 0
      %2190 = vmatpush1.bf16.msra.mxu0 %v1849
      %2191 = vmatprep.subr.bf16.mxu0 0
      %2192 = vmatpush1.bf16.msra.mxu0 %v1850
      %2193 = vmatprep.subr.bf16.mxu0 0
      %2194 = vmatpush1.bf16.msra.mxu0 %v1851
      %2195 = vmatprep.subr.bf16.mxu0 0
      %2196 = vmatpush1.bf16.msra.mxu0 %v1852
      %2197 = vmatprep.subr.bf16.mxu0 0
      %2198 = vmatpush1.bf16.msra.mxu0 %v1853
      %2199 = vmatprep.subr.bf16.mxu0 0
      %2200 = vmatpush1.bf16.msra.mxu0 %v1854
      %2201 = vmatprep.subr.bf16.mxu0 0
      %2202 = vmatpush1.bf16.msra.mxu0 %v1855
      %2203 = vmatprep.subr.bf16.mxu0 0
      %2204 = vmatpush1.bf16.msra.mxu0 %v1856
      %2205 = vmatprep.subr.bf16.mxu0 0
      %2206 = vmatpush1.bf16.msra.mxu0 0
      %2207 = vmatprep.subr.bf16.mxu0 0
      %2208 = vmatpush1.bf16.msra.mxu0 0
      %2209 = vmatprep.subr.bf16.mxu0 0
      %2210 = vmatpush1.bf16.msra.mxu0 0
      %2211 = vmatprep.subr.bf16.mxu0 0
      %2212 = vmatpush1.bf16.msra.mxu0 0
      %2213 = vmatprep.subr.bf16.mxu0 0
      %2214 = vmatpush1.bf16.msra.mxu0 0
      %2215 = vmatprep.subr.bf16.mxu0 0
      %2216 = vmatpush1.bf16.msra.mxu0 0
      %2217 = vmatprep.subr.bf16.mxu0 0
      %2218 = vmatpush1.bf16.msra.mxu0 0
      %2219 = vmatprep.subr.bf16.mxu0 0
      %2220 = vmatpush1.bf16.msra.mxu0 0
      %2221 = vmatprep.mubr.bf16.mxu0 0
      %2222 = vmatmul.mubr.bf16.gmra.mrb[0].mxu0 %v1325
      %v2223 = vpop.f32.mrb[0].mxu0
      %v2224 = vadd.f32 %v2159, %v2223
      %v2225 = vpop.f32.mrb[0].mxu0
      %v2226 = vpop.f32.mrb[0].mxu0
      %v2227 = vadd.f32 %v2162, %v2226
      %v2228 = vpop.f32.mrb[0].mxu0
      %2229 = vmatprep.mubr.bf16.mxu0 0
      %2230 = vmatmul.mubr.bf16.gmra.mrb[0].mxu0 %v1334
      %v2231 = vpop.f32.mrb[0].mxu0
      %v2232 = vadd.f32 %v2167, %v2231
      %v2233 = vpop.f32.mrb[0].mxu0
      %v2234 = vpop.f32.mrb[0].mxu0
      %v2235 = vadd.f32 %v2170, %v2234
      %v2236 = vpop.f32.mrb[0].mxu0
      %2237 = vmatprep.mubr.bf16.mxu0 0
      %2238 = vmatmul.mubr.bf16.gmra.mrb[0].mxu0 %v1343
      %v2239 = vpop.f32.mrb[0].mxu0
      %v2240 = vadd.f32 %v2175, %v2239
      %v2241 = vpop.f32.mrb[0].mxu0
      %v2242 = vpop.f32.mrb[0].mxu0
      %v2243 = vadd.f32 %v2178, %v2242
      %v2244 = vpop.f32.mrb[0].mxu0
      %2245 = vmatprep.mubr.bf16.mxu0 0
      %2246 = vmatmul.mubr.bf16.gmra.mrb[0].mxu0 %v1352
      %v2247 = vpop.f32.mrb[0].mxu0
      %v2248 = vadd.f32 %v2183, %v2247
      %v2249 = vpop.f32.mrb[0].mxu0
      %v2250 = vpop.f32.mrb[0].mxu0
      %v2251 = vadd.f32 %v2186, %v2250
      %v2252 = vpop.f32.mrb[0].mxu0
      %2253 = vdwg.mxu0
      %v2254 = vld [vmem:[%s5] sm:$0x1]
      %v2256 = vlaneseq
      %v2257 = vshrl.u32 %v2256, 7
      %v2258 = vsub.s32 0, %v2257
      %v2259 = vrot.slane %v2254, %v2258
      %v2261 = vmul.f32 %v2224, %v2259
      %v2262 = vmul.f32 %v2227, %v2259
      %v2263 = vmul.f32 %v2232, %v2259
      %v2264 = vmul.f32 %v2235, %v2259
      %v2265 = vmul.f32 %v2240, %v2259
      %v2266 = vmul.f32 %v2243, %v2259
      %v2267 = vmul.f32 %v2248, %v2259
      %v2268 = vmul.f32 %v2251, %v2259
      %v2269 = vld [vmem:[%s6] sm:$0x1]
      %v2271 = vlaneseq
      %v2272 = vshrl.u32 %v2271, 7
      %v2273 = vsub.s32 0, %v2272
      %v2274 = vrot.slane %v2269, %v2273
      %v2276 = vadd.f32 %v2261, %v2274
      %v2277 = vadd.f32 %v2262, %v2274
      %v2278 = vadd.f32 %v2263, %v2274
      %v2279 = vadd.f32 %v2264, %v2274
      %v2280 = vadd.f32 %v2265, %v2274
      %v2281 = vadd.f32 %v2266, %v2274
      %v2282 = vadd.f32 %v2267, %v2274
      %v2283 = vadd.f32 %v2268, %v2274
      %v2284 = vmax.f32 %v2276, 0.0
      %v2285 = vmax.f32 %v2277, 0.0
      %v2286 = vmax.f32 %v2278, 0.0
      %v2287 = vmax.f32 %v2279, 0.0
      %v2288 = vmax.f32 %v2280, 0.0
      %v2289 = vmax.f32 %v2281, 0.0
      %v2290 = vmax.f32 %v2282, 0.0
      %v2291 = vmax.f32 %v2283, 0.0
      %2292 = vst [vmem:[%s278] sm:$0xff] %v2284
      %2293 = vst [vmem:[%s278 + $0x8] sm:$0xff] %v2285
      %2294 = vst [vmem:[%s278 + $0x10] sm:$0xff] %v2286
      %2295 = vst [vmem:[%s278 + $0x18] sm:$0xff] %v2287
      %2296 = vst [vmem:[%s278 + $0x20] sm:$0xff] %v2288
      %2297 = vst [vmem:[%s278 + $0x28] sm:$0xff] %v2289
      %2298 = vst [vmem:[%s278 + $0x30] sm:$0xff] %v2290
      %2299 = vst [vmem:[%s278 + $0x38] sm:$0xff] %v2291
      %p2300 = scmp.lt.s32.totalorder %s18, 1
      %s2301 = scalar_select %p2300, %s18, 1
      %s2302 = smul.addr %s2301, 8
      %s2303 = smul.addr %s2302, 8
      %s2304 = scalar_lea.vmem %s7, %s2303
      // Predicated region
      $region49: #{down_pallas.1} parent=47 // pred_check
        %p2305 = pneg %p188
      $region50: #{down_pallas.1} parent=47 // pred_check_branch
        %2307 = sbr.rel (%p2305) target = $region52
      $region51: #{down_pallas.1} parent=47 // pred_region
        _
      $region52: #{down_pallas.1} parent=47 // pred_fallthru
        _
    $region48: #{down_pallas.1} parent=5 // pred_fallthru
      _
    %p2308 = scmp.le.s32.totalorder 2, %s13
    // Predicated region
    $region53: #{down_pallas.1} parent=5 // pred_check
      %p2309 = pneg %p2308
    $region54: #{down_pallas.1} parent=5 // pred_check_branch
      %2311 = sbr.rel (%p2309) target = $region56
    $region55: #{down_pallas.1} parent=5 // pred_region
      %s2312 = ssub.s32 %s13, 2
      // Predicated region
      $region57: #{down_pallas.1} parent=55 // pred_check
        %p2313 = pneg %p194
      $region58: #{down_pallas.1} parent=55 // pred_check_branch
        %2315 = sbr.rel (%p2313) target = $region60
      $region59: #{down_pallas.1} parent=55 // pred_region
        %p2316 = scmp.lt.s32.totalorder %s19, 1
        %s2317 = scalar_select %p2316, %s19, 1
        %s2318 = smul.addr %s2317, 8
        %s2319 = smul.addr %s2318, 8
        %s2320 = scalar_lea.vmem %s7, %s2319
      $region60: #{down_pallas.1} parent=55 // pred_fallthru
        _
    $region56: #{down_pallas.1} parent=5 // pred_fallthru
      _
  $region6: #{down_pallas.1} parent=0 // loop_footer
    %s17 = sadd.s32 1, %s13
  $region7: #{down_pallas.1} parent=0 // loop_footer_branch
    %12 = sbr.rel target = $region3
  $region8: #{down_pallas.1} parent=0 // loop_exit
    _

</llo_original>
